<compile_context>
chip_gen: v6e
topology: v6e:2x2x1
jax: 0.10.0
libtpu: 0.0.40
codegen_flags: <defaults>
</compile_context>

<pallas_src>
import math

import jax
import jax.numpy as jnp
from jax import lax
from jax.experimental import pallas as pl
from jax.experimental.pallas import tpu as pltpu

D_MODEL = 32
N_HEADS = 4
D_HEAD = D_MODEL // N_HEADS
D_FF = 64
LN_EPS = 1e-5


# ---------------------------------------------------------------------------
# Fused kernel: pre-encode + alpha scale + PE + full post-norm encoder layer.
# All matmul weights arrive pre-transposed as (K, N) so y = x @ W + b directly.
# ---------------------------------------------------------------------------
def peencoder_kernel(alpha_ref,                       # SMEM (1, 1)
                     x_ref, pe_ref, mask_ref,         # (B*S, D), (B*S, D), (S, S)
                     w_pre_ref, b_pre_ref,            # (D, D), (1, D)
                     w_in_ref, b_in_ref,              # (D, 3D), (1, 3D)
                     wo_ref, bo_ref,                  # (D, D), (1, D)
                     ln1_g_ref, ln1_b_ref,            # (1, D)
                     w1_ref, b1_ref,                  # (D, D_FF), (1, D_FF)
                     w2_ref, b2_ref,                  # (D_FF, D), (1, D)
                     ln2_g_ref, ln2_b_ref,            # (1, D)
                     out_ref):                        # (B*S, D)
    x = x_ref[...]
    pe = pe_ref[...]
    mask = mask_ref[...]
    S = mask.shape[0]
    BS, D = x.shape
    B = BS // S
    alpha = alpha_ref[0, 0]                           # scalar read from SMEM

    # ---- preenc (residual Linear) + alpha scale + positional encoding ----
    pre = jnp.dot(x, w_pre_ref[...], preferred_element_type=jnp.float32) + b_pre_ref[...]
    y = (pre + x) * alpha + pe                        # (B*S, D)

    # ---- fused QKV projection: one matmul, (B*S, 3D) ----
    qkv = jnp.dot(y, w_in_ref[...], preferred_element_type=jnp.float32) + b_in_ref[...]

    # ---- multi-head attention (per batch element; heads accumulated into the
    #      output projection so no lane-axis concat is needed) ----
    scale = 1.0 / math.sqrt(D_HEAD)
    wo_t = wo_ref[...]                                # (D, D): ctx @ wo_t
    nt_dims = (((1,), (1,)), ((), ()))                # q @ k^T without a transpose
    per_batch = []
    for bi in range(B):                               # B, N_HEADS are static -> unrolled
        r = bi * S
        qb = qkv[r:r + S, 0:D]
        kb = qkv[r:r + S, D:2 * D]
        vb = qkv[r:r + S, 2 * D:3 * D]
        acc = jnp.zeros((S, D), jnp.float32)
        for h in range(N_HEADS):
            c = h * D_HEAD
            qh = qb[:, c:c + D_HEAD]
            kh = kb[:, c:c + D_HEAD]
            vh = vb[:, c:c + D_HEAD]
            s = lax.dot_general(qh, kh, nt_dims,
                                preferred_element_type=jnp.float32) * scale + mask
            s = s - jnp.max(s, axis=-1, keepdims=True)
            p = jnp.exp(s)
            p = p * pl.reciprocal(jnp.sum(p, axis=-1, keepdims=True), approx=False)
            ctx_h = jnp.dot(p, vh, preferred_element_type=jnp.float32)        # (S, Dh)
            acc = acc + jnp.dot(ctx_h, wo_t[c:c + D_HEAD, :],
                                preferred_element_type=jnp.float32)           # (S, D)
        per_batch.append(acc)
    attn = jnp.concatenate(per_batch, axis=0) + bo_ref[...]   # sublane-axis stack only

    # ---- residual + LayerNorm 1 (post-norm, PyTorch default) ----
    h1 = y + attn
    mu1 = jnp.mean(h1, axis=-1, keepdims=True)
    var1 = jnp.mean((h1 - mu1) ** 2, axis=-1, keepdims=True)
    h1n = (h1 - mu1) * lax.rsqrt(var1 + LN_EPS) * ln1_g_ref[...] + ln1_b_ref[...]

    # ---- FFN: Linear -> ReLU -> Linear ----
    f = jnp.dot(h1n, w1_ref[...], preferred_element_type=jnp.float32) + b1_ref[...]
    f = jnp.maximum(f, 0.0)
    f = jnp.dot(f, w2_ref[...], preferred_element_type=jnp.float32) + b2_ref[...]

    # ---- residual + LayerNorm 2 ----
    h2 = h1n + f
    mu2 = jnp.mean(h2, axis=-1, keepdims=True)
    var2 = jnp.mean((h2 - mu2) ** 2, axis=-1, keepdims=True)
    out_ref[...] = (h2 - mu2) * lax.rsqrt(var2 + LN_EPS) * ln2_g_ref[...] + ln2_b_ref[...]


# ---------------------------------------------------------------------------
# Wrapper: host-side layout prep (fold batch, pre-transpose weights, tile PE),
# single no-grid pallas_call, alpha in SMEM, everything else resident in VMEM.
# ---------------------------------------------------------------------------
def _pe_encoder(src, src_mask, w_pre, b_pre, alpha, pe, enc_params):
    B, S, D = src.shape
    (w_in, b_in, wo, bo, g1, be1, w1, b1, w2, b2, g2, be2) = enc_params

    x2d = src.reshape(B * S, D)            # fold batch into matmul rows
    pe2d = jnp.tile(pe, (B, 1))            # (B*S, D) additive positional encoding

    args = (alpha,
            x2d, pe2d, src_mask,
            w_pre.T, b_pre,
            w_in.T, b_in,
            wo.T, bo,
            g1, be1,
            w1.T, b1,
            w2.T, b2,
            g2, be2)

    smem = pl.BlockSpec(memory_space=pltpu.MemorySpace.SMEM)
    vmem = pl.BlockSpec(memory_space=pltpu.MemorySpace.VMEM)

    out2d = pl.pallas_call(
        peencoder_kernel,
        out_shape=jax.ShapeDtypeStruct((B * S, D), jnp.float32),
        in_specs=[smem] + [vmem] * (len(args) - 1),
        out_specs=vmem,
    )(*args)
    return out2d.reshape(B, S, D)


pe_encoder = jax.jit(_pe_encoder)


# ---------------------------------------------------------------------------
# Pure-JAX reference (mirrors the PyTorch module op-for-op)
# ---------------------------------------------------------------------------
def reference(src, mask, w_pre, b_pre, alpha, pe, params):
    (w_in, b_in, wo, bo, g1, be1, w1, b1, w2, b2, g2, be2) = params
    x = (src @ w_pre.T + b_pre) + src
    x = x * alpha[0, 0]
    x = x + pe[None]
    D = x.shape[-1]
    q = x @ w_in[0:D].T + b_in[0, 0:D]
    k = x @ w_in[D:2 * D].T + b_in[0, D:2 * D]
    v = x @ w_in[2 * D:3 * D].T + b_in[0, 2 * D:3 * D]
    scale = 1.0 / math.sqrt(D_HEAD)
    heads = []
    for h in range(N_HEADS):
        sl = slice(h * D_HEAD, (h + 1) * D_HEAD)
        s = jnp.einsum("bqd,bkd->bqk", q[..., sl], k[..., sl]) * scale + mask[None]
        p = jax.nn.softmax(s, axis=-1)
        heads.append(jnp.einsum("bqk,bkd->bqd", p, v[..., sl]))
    ctx = jnp.concatenate(heads, axis=-1)
    attn = ctx @ wo.T + bo

    def ln(z, g, b):
        mu = jnp.mean(z, axis=-1, keepdims=True)
        var = jnp.mean((z - mu) ** 2, axis=-1, keepdims=True)
        return (z - mu) * jax.lax.rsqrt(var + LN_EPS) * g + b

    h1 = ln(x + attn, g1, be1)
    f = jnp.maximum(h1 @ w1.T + b1, 0.0) @ w2.T + b2
    return ln(h1 + f, g2, be2)


def sinusoidal_pe(S, D):
    pos = jnp.arange(S, dtype=jnp.float32)[:, None]
    div = jnp.exp(jnp.arange(0, D, 2, dtype=jnp.float32) * (-math.log(10000.0) / D))
    pe = jnp.zeros((S, D), jnp.float32)
    pe = pe.at[:, 0::2].set(jnp.sin(pos * div))
    pe = pe.at[:, 1::2].set(jnp.cos(pos * div))
    return pe


if __name__ == "__main__":
    B, S, D = 2, 8, D_MODEL
    key = jax.random.PRNGKey(0)
    ks = jax.random.split(key, 10)

    src = jax.random.normal(ks[0], (B, S, D), jnp.float32)
    # additive float src_mask (S, S): causal-style for demonstration
    src_mask = jnp.where(jnp.tril(jnp.ones((S, S), bool)), 0.0, -1e9).astype(jnp.float32)

    # preenc / scale / pos_enc parameters
    w_pre = jax.random.normal(ks[1], (D, D), jnp.float32) * 0.05
    b_pre = jax.random.normal(ks[2], (1, D), jnp.float32) * 0.05
    alpha = jnp.full((1, 1), math.sqrt(D), jnp.float32)
    pe = sinusoidal_pe(S, D)

    # encoder layer parameters (PyTorch nn.TransformerEncoderLayer shapes)
    w_in = jax.random.normal(ks[3], (3 * D, D), jnp.float32) * 0.05
    b_in = jax.random.normal(ks[4], (1, 3 * D), jnp.float32) * 0.05
    wo = jax.random.normal(ks[5], (D, D), jnp.float32) * 0.05
    bo = jax.random.normal(ks[6], (1, D), jnp.float32) * 0.05
    ln1_g = jnp.ones((1, D), jnp.float32)
    ln1_b = jnp.zeros((1, D), jnp.float32)
    w1 = jax.random.normal(ks[7], (D_FF, D), jnp.float32) * 0.05
    b1 = jax.random.normal(ks[8], (1, D_FF), jnp.float32) * 0.05
    w2 = jax.random.normal(ks[9], (D, D_FF), jnp.float32) * 0.05
    b2 = jnp.zeros((1, D), jnp.float32)
    ln2_g = jnp.ones((1, D), jnp.float32)
    ln2_b = jnp.zeros((1, D), jnp.float32)

    enc_params = (w_in, b_in, wo, bo, ln1_g, ln1_b, w1, b1, w2, b2, ln2_g, ln2_b)

    # ---- run fused kernel ----
    out = pe_encoder(src, src_mask, w_pre, b_pre, alpha, pe, enc_params)
    out = jax.block_until_ready(out)

    # ---- verify against pure-JAX reference ----
    ref = reference(src, src_mask, w_pre, b_pre, alpha, pe, enc_params)
    assert out.shape == (B, S, D)
    assert bool(jnp.all(jnp.isfinite(out)))
    assert bool(jnp.allclose(out, ref, rtol=1e-4, atol=1e-4)), \
        f"max err {float(jnp.max(jnp.abs(out - ref)))}"

    # TODO(synk): dropout inside the injected encoder submodule is omitted (eval-mode semantics).
    print("KERNEL_OK")
</pallas_src>

<mosaic_0001>
module attributes {stable_mosaic.version = 11 : i64} {
  func.func @peencoder_kernel(%arg0: memref<1x1xf32, #tpu.memory_space<smem>>, %arg1: memref<16x32xf32, #tpu.memory_space<vmem>>, %arg2: memref<16x32xf32, #tpu.memory_space<vmem>>, %arg3: memref<8x8xf32, #tpu.memory_space<vmem>>, %arg4: memref<32x32xf32, #tpu.memory_space<vmem>>, %arg5: memref<1x32xf32, #tpu.memory_space<vmem>>, %arg6: memref<32x96xf32, #tpu.memory_space<vmem>>, %arg7: memref<1x96xf32, #tpu.memory_space<vmem>>, %arg8: memref<32x32xf32, #tpu.memory_space<vmem>>, %arg9: memref<1x32xf32, #tpu.memory_space<vmem>>, %arg10: memref<1x32xf32, #tpu.memory_space<vmem>>, %arg11: memref<1x32xf32, #tpu.memory_space<vmem>>, %arg12: memref<32x64xf32, #tpu.memory_space<vmem>>, %arg13: memref<1x64xf32, #tpu.memory_space<vmem>>, %arg14: memref<64x32xf32, #tpu.memory_space<vmem>>, %arg15: memref<1x32xf32, #tpu.memory_space<vmem>>, %arg16: memref<1x32xf32, #tpu.memory_space<vmem>>, %arg17: memref<1x32xf32, #tpu.memory_space<vmem>>, %arg18: memref<16x32xf32, #tpu.memory_space<vmem>>) attributes {dimension_semantics = [], scalar_prefetch = 0 : i64, scratch_operands = 0 : i64, tpu.core_type = #tpu.core_type<tc>} {
    %c0 = arith.constant 0 : index
    %c0_0 = arith.constant 0 : index
    %0 = vector.load %arg1[%c0, %c0_0] : memref<16x32xf32, #tpu.memory_space<vmem>>, vector<16x32xf32>
    %c0_1 = arith.constant 0 : index
    %c0_2 = arith.constant 0 : index
    %1 = vector.load %arg2[%c0_1, %c0_2] : memref<16x32xf32, #tpu.memory_space<vmem>>, vector<16x32xf32>
    %c0_3 = arith.constant 0 : index
    %c0_4 = arith.constant 0 : index
    %2 = vector.load %arg3[%c0_3, %c0_4] : memref<8x8xf32, #tpu.memory_space<vmem>>, vector<8x8xf32>
    %c0_5 = arith.constant 0 : index
    %c0_6 = arith.constant 0 : index
    %3 = memref.load %arg0[%c0_5, %c0_6] : memref<1x1xf32, #tpu.memory_space<smem>>
    %c0_7 = arith.constant 0 : index
    %c0_8 = arith.constant 0 : index
    %4 = vector.load %arg4[%c0_7, %c0_8] : memref<32x32xf32, #tpu.memory_space<vmem>>, vector<32x32xf32>
    %cst = arith.constant dense<0.000000e+00> : vector<16x32xf32>
    %5 = tpu.matmul %0, %4, %cst {dimension_numbers = #tpu.dot_dimension_numbers<[1], [0], [0], [1], [0, 0, 1, 1], [], []>} : vector<16x32xf32>, vector<32x32xf32>, vector<16x32xf32> -> vector<16x32xf32>
    %c0_9 = arith.constant 0 : index
    %c0_10 = arith.constant 0 : index
    %6 = vector.load %arg5[%c0_9, %c0_10] : memref<1x32xf32, #tpu.memory_space<vmem>>, vector<1x32xf32>
    %7 = vector.broadcast %6 : vector<1x32xf32> to vector<16x32xf32>
    %8 = arith.addf %5, %7 : vector<16x32xf32>
    %9 = arith.addf %8, %0 : vector<16x32xf32>
    %10 = vector.broadcast %3 : f32 to vector<16x32xf32>
    %11 = arith.mulf %9, %10 : vector<16x32xf32>
    %12 = arith.addf %11, %1 : vector<16x32xf32>
    %c0_11 = arith.constant 0 : index
    %c0_12 = arith.constant 0 : index
    %13 = vector.load %arg6[%c0_11, %c0_12] : memref<32x96xf32, #tpu.memory_space<vmem>>, vector<32x96xf32>
    %cst_13 = arith.constant dense<0.000000e+00> : vector<16x96xf32>
    %14 = tpu.matmul %12, %13, %cst_13 {dimension_numbers = #tpu.dot_dimension_numbers<[1], [0], [0], [1], [0, 0, 1, 1], [], []>} : vector<16x32xf32>, vector<32x96xf32>, vector<16x96xf32> -> vector<16x96xf32>
    %c0_14 = arith.constant 0 : index
    %c0_15 = arith.constant 0 : index
    %15 = vector.load %arg7[%c0_14, %c0_15] : memref<1x96xf32, #tpu.memory_space<vmem>>, vector<1x96xf32>
    %16 = vector.broadcast %15 : vector<1x96xf32> to vector<16x96xf32>
    %17 = arith.addf %14, %16 : vector<16x96xf32>
    %c0_16 = arith.constant 0 : index
    %c0_17 = arith.constant 0 : index
    %18 = vector.load %arg8[%c0_16, %c0_17] : memref<32x32xf32, #tpu.memory_space<vmem>>, vector<32x32xf32>
    %19 = vector.extract_strided_slice %17 {offsets = [0, 0], sizes = [8, 32], strides = [1, 1]} : vector<16x96xf32> to vector<8x32xf32>
    %20 = vector.extract_strided_slice %17 {offsets = [0, 32], sizes = [8, 32], strides = [1, 1]} : vector<16x96xf32> to vector<8x32xf32>
    %21 = vector.extract_strided_slice %17 {offsets = [0, 64], sizes = [8, 32], strides = [1, 1]} : vector<16x96xf32> to vector<8x32xf32>
    %cst_18 = arith.constant 0.000000e+00 : f32
    %22 = vector.broadcast %cst_18 : f32 to vector<8x32xf32>
    %23 = vector.extract_strided_slice %19 {offsets = [0, 0], sizes = [8, 8], strides = [1, 1]} : vector<8x32xf32> to vector<8x8xf32>
    %24 = vector.extract_strided_slice %20 {offsets = [0, 0], sizes = [8, 8], strides = [1, 1]} : vector<8x32xf32> to vector<8x8xf32>
    %25 = vector.extract_strided_slice %21 {offsets = [0, 0], sizes = [8, 8], strides = [1, 1]} : vector<8x32xf32> to vector<8x8xf32>
    %cst_19 = arith.constant dense<0.000000e+00> : vector<8x8xf32>
    %26 = tpu.matmul %23, %24, %cst_19 {dimension_numbers = #tpu.dot_dimension_numbers<[1], [1], [0], [0], [0, 0, 1, 0], [], []>} : vector<8x8xf32>, vector<8x8xf32>, vector<8x8xf32> -> vector<8x8xf32>
    %cst_20 = arith.constant 0.353553385 : f32
    %27 = vector.broadcast %cst_20 : f32 to vector<8x8xf32>
    %28 = arith.mulf %26, %27 : vector<8x8xf32>
    %29 = arith.addf %28, %2 : vector<8x8xf32>
    %cst_21 = arith.constant dense<0xFF800000> : vector<8xf32>
    %30 = vector.multi_reduction <maximumf>, %29, %cst_21 [1] : vector<8x8xf32> to vector<8xf32>
    %31 = vector.shape_cast %30 : vector<8xf32> to vector<8x1xf32>
    %32 = vector.broadcast %31 : vector<8x1xf32> to vector<8x8xf32>
    %33 = arith.subf %29, %32 : vector<8x8xf32>
    %34 = math.exp %33 : vector<8x8xf32>
    %cst_22 = arith.constant dense<0.000000e+00> : vector<8xf32>
    %35 = vector.multi_reduction <add>, %34, %cst_22 [1] : vector<8x8xf32> to vector<8xf32>
    %36 = vector.shape_cast %35 : vector<8xf32> to vector<8x1xf32>
    %37 = tpu.reciprocal %36 : vector<8x1xf32> -> vector<8x1xf32>
    %38 = vector.broadcast %37 : vector<8x1xf32> to vector<8x8xf32>
    %39 = arith.mulf %34, %38 : vector<8x8xf32>
    %cst_23 = arith.constant dense<0.000000e+00> : vector<8x8xf32>
    %40 = tpu.matmul %39, %25, %cst_23 {dimension_numbers = #tpu.dot_dimension_numbers<[1], [0], [0], [1], [0, 0, 1, 1], [], []>} : vector<8x8xf32>, vector<8x8xf32>, vector<8x8xf32> -> vector<8x8xf32>
    %41 = vector.extract_strided_slice %18 {offsets = [0, 0], sizes = [8, 32], strides = [1, 1]} : vector<32x32xf32> to vector<8x32xf32>
    %cst_24 = arith.constant dense<0.000000e+00> : vector<8x32xf32>
    %42 = tpu.matmul %40, %41, %cst_24 {dimension_numbers = #tpu.dot_dimension_numbers<[1], [0], [0], [1], [0, 0, 1, 1], [], []>} : vector<8x8xf32>, vector<8x32xf32>, vector<8x32xf32> -> vector<8x32xf32>
    %43 = arith.addf %22, %42 : vector<8x32xf32>
    %44 = vector.extract_strided_slice %19 {offsets = [0, 8], sizes = [8, 8], strides = [1, 1]} : vector<8x32xf32> to vector<8x8xf32>
    %45 = vector.extract_strided_slice %20 {offsets = [0, 8], sizes = [8, 8], strides = [1, 1]} : vector<8x32xf32> to vector<8x8xf32>
    %46 = vector.extract_strided_slice %21 {offsets = [0, 8], sizes = [8, 8], strides = [1, 1]} : vector<8x32xf32> to vector<8x8xf32>
    %cst_25 = arith.constant dense<0.000000e+00> : vector<8x8xf32>
    %47 = tpu.matmul %44, %45, %cst_25 {dimension_numbers = #tpu.dot_dimension_numbers<[1], [1], [0], [0], [0, 0, 1, 0], [], []>} : vector<8x8xf32>, vector<8x8xf32>, vector<8x8xf32> -> vector<8x8xf32>
    %cst_26 = arith.constant 0.353553385 : f32
    %48 = vector.broadcast %cst_26 : f32 to vector<8x8xf32>
    %49 = arith.mulf %47, %48 : vector<8x8xf32>
    %50 = arith.addf %49, %2 : vector<8x8xf32>
    %cst_27 = arith.constant dense<0xFF800000> : vector<8xf32>
    %51 = vector.multi_reduction <maximumf>, %50, %cst_27 [1] : vector<8x8xf32> to vector<8xf32>
    %52 = vector.shape_cast %51 : vector<8xf32> to vector<8x1xf32>
    %53 = vector.broadcast %52 : vector<8x1xf32> to vector<8x8xf32>
    %54 = arith.subf %50, %53 : vector<8x8xf32>
    %55 = math.exp %54 : vector<8x8xf32>
    %cst_28 = arith.constant dense<0.000000e+00> : vector<8xf32>
    %56 = vector.multi_reduction <add>, %55, %cst_28 [1] : vector<8x8xf32> to vector<8xf32>
    %57 = vector.shape_cast %56 : vector<8xf32> to vector<8x1xf32>
    %58 = tpu.reciprocal %57 : vector<8x1xf32> -> vector<8x1xf32>
    %59 = vector.broadcast %58 : vector<8x1xf32> to vector<8x8xf32>
    %60 = arith.mulf %55, %59 : vector<8x8xf32>
    %cst_29 = arith.constant dense<0.000000e+00> : vector<8x8xf32>
    %61 = tpu.matmul %60, %46, %cst_29 {dimension_numbers = #tpu.dot_dimension_numbers<[1], [0], [0], [1], [0, 0, 1, 1], [], []>} : vector<8x8xf32>, vector<8x8xf32>, vector<8x8xf32> -> vector<8x8xf32>
    %62 = vector.extract_strided_slice %18 {offsets = [8, 0], sizes = [8, 32], strides = [1, 1]} : vector<32x32xf32> to vector<8x32xf32>
    %cst_30 = arith.constant dense<0.000000e+00> : vector<8x32xf32>
    %63 = tpu.matmul %61, %62, %cst_30 {dimension_numbers = #tpu.dot_dimension_numbers<[1], [0], [0], [1], [0, 0, 1, 1], [], []>} : vector<8x8xf32>, vector<8x32xf32>, vector<8x32xf32> -> vector<8x32xf32>
    %64 = arith.addf %43, %63 : vector<8x32xf32>
    %65 = vector.extract_strided_slice %19 {offsets = [0, 16], sizes = [8, 8], strides = [1, 1]} : vector<8x32xf32> to vector<8x8xf32>
    %66 = vector.extract_strided_slice %20 {offsets = [0, 16], sizes = [8, 8], strides = [1, 1]} : vector<8x32xf32> to vector<8x8xf32>
    %67 = vector.extract_strided_slice %21 {offsets = [0, 16], sizes = [8, 8], strides = [1, 1]} : vector<8x32xf32> to vector<8x8xf32>
    %cst_31 = arith.constant dense<0.000000e+00> : vector<8x8xf32>
    %68 = tpu.matmul %65, %66, %cst_31 {dimension_numbers = #tpu.dot_dimension_numbers<[1], [1], [0], [0], [0, 0, 1, 0], [], []>} : vector<8x8xf32>, vector<8x8xf32>, vector<8x8xf32> -> vector<8x8xf32>
    %cst_32 = arith.constant 0.353553385 : f32
    %69 = vector.broadcast %cst_32 : f32 to vector<8x8xf32>
    %70 = arith.mulf %68, %69 : vector<8x8xf32>
    %71 = arith.addf %70, %2 : vector<8x8xf32>
    %cst_33 = arith.constant dense<0xFF800000> : vector<8xf32>
    %72 = vector.multi_reduction <maximumf>, %71, %cst_33 [1] : vector<8x8xf32> to vector<8xf32>
    %73 = vector.shape_cast %72 : vector<8xf32> to vector<8x1xf32>
    %74 = vector.broadcast %73 : vector<8x1xf32> to vector<8x8xf32>
    %75 = arith.subf %71, %74 : vector<8x8xf32>
    %76 = math.exp %75 : vector<8x8xf32>
    %cst_34 = arith.constant dense<0.000000e+00> : vector<8xf32>
    %77 = vector.multi_reduction <add>, %76, %cst_34 [1] : vector<8x8xf32> to vector<8xf32>
    %78 = vector.shape_cast %77 : vector<8xf32> to vector<8x1xf32>
    %79 = tpu.reciprocal %78 : vector<8x1xf32> -> vector<8x1xf32>
    %80 = vector.broadcast %79 : vector<8x1xf32> to vector<8x8xf32>
    %81 = arith.mulf %76, %80 : vector<8x8xf32>
    %cst_35 = arith.constant dense<0.000000e+00> : vector<8x8xf32>
    %82 = tpu.matmul %81, %67, %cst_35 {dimension_numbers = #tpu.dot_dimension_numbers<[1], [0], [0], [1], [0, 0, 1, 1], [], []>} : vector<8x8xf32>, vector<8x8xf32>, vector<8x8xf32> -> vector<8x8xf32>
    %83 = vector.extract_strided_slice %18 {offsets = [16, 0], sizes = [8, 32], strides = [1, 1]} : vector<32x32xf32> to vector<8x32xf32>
    %cst_36 = arith.constant dense<0.000000e+00> : vector<8x32xf32>
    %84 = tpu.matmul %82, %83, %cst_36 {dimension_numbers = #tpu.dot_dimension_numbers<[1], [0], [0], [1], [0, 0, 1, 1], [], []>} : vector<8x8xf32>, vector<8x32xf32>, vector<8x32xf32> -> vector<8x32xf32>
    %85 = arith.addf %64, %84 : vector<8x32xf32>
    %86 = vector.extract_strided_slice %19 {offsets = [0, 24], sizes = [8, 8], strides = [1, 1]} : vector<8x32xf32> to vector<8x8xf32>
    %87 = vector.extract_strided_slice %20 {offsets = [0, 24], sizes = [8, 8], strides = [1, 1]} : vector<8x32xf32> to vector<8x8xf32>
    %88 = vector.extract_strided_slice %21 {offsets = [0, 24], sizes = [8, 8], strides = [1, 1]} : vector<8x32xf32> to vector<8x8xf32>
    %cst_37 = arith.constant dense<0.000000e+00> : vector<8x8xf32>
    %89 = tpu.matmul %86, %87, %cst_37 {dimension_numbers = #tpu.dot_dimension_numbers<[1], [1], [0], [0], [0, 0, 1, 0], [], []>} : vector<8x8xf32>, vector<8x8xf32>, vector<8x8xf32> -> vector<8x8xf32>
    %cst_38 = arith.constant 0.353553385 : f32
    %90 = vector.broadcast %cst_38 : f32 to vector<8x8xf32>
    %91 = arith.mulf %89, %90 : vector<8x8xf32>
    %92 = arith.addf %91, %2 : vector<8x8xf32>
    %cst_39 = arith.constant dense<0xFF800000> : vector<8xf32>
    %93 = vector.multi_reduction <maximumf>, %92, %cst_39 [1] : vector<8x8xf32> to vector<8xf32>
    %94 = vector.shape_cast %93 : vector<8xf32> to vector<8x1xf32>
    %95 = vector.broadcast %94 : vector<8x1xf32> to vector<8x8xf32>
    %96 = arith.subf %92, %95 : vector<8x8xf32>
    %97 = math.exp %96 : vector<8x8xf32>
    %cst_40 = arith.constant dense<0.000000e+00> : vector<8xf32>
    %98 = vector.multi_reduction <add>, %97, %cst_40 [1] : vector<8x8xf32> to vector<8xf32>
    %99 = vector.shape_cast %98 : vector<8xf32> to vector<8x1xf32>
    %100 = tpu.reciprocal %99 : vector<8x1xf32> -> vector<8x1xf32>
    %101 = vector.broadcast %100 : vector<8x1xf32> to vector<8x8xf32>
    %102 = arith.mulf %97, %101 : vector<8x8xf32>
    %cst_41 = arith.constant dense<0.000000e+00> : vector<8x8xf32>
    %103 = tpu.matmul %102, %88, %cst_41 {dimension_numbers = #tpu.dot_dimension_numbers<[1], [0], [0], [1], [0, 0, 1, 1], [], []>} : vector<8x8xf32>, vector<8x8xf32>, vector<8x8xf32> -> vector<8x8xf32>
    %104 = vector.extract_strided_slice %18 {offsets = [24, 0], sizes = [8, 32], strides = [1, 1]} : vector<32x32xf32> to vector<8x32xf32>
    %cst_42 = arith.constant dense<0.000000e+00> : vector<8x32xf32>
    %105 = tpu.matmul %103, %104, %cst_42 {dimension_numbers = #tpu.dot_dimension_numbers<[1], [0], [0], [1], [0, 0, 1, 1], [], []>} : vector<8x8xf32>, vector<8x32xf32>, vector<8x32xf32> -> vector<8x32xf32>
    %106 = arith.addf %85, %105 : vector<8x32xf32>
    %107 = vector.extract_strided_slice %17 {offsets = [8, 0], sizes = [8, 32], strides = [1, 1]} : vector<16x96xf32> to vector<8x32xf32>
    %108 = vector.extract_strided_slice %17 {offsets = [8, 32], sizes = [8, 32], strides = [1, 1]} : vector<16x96xf32> to vector<8x32xf32>
    %109 = vector.extract_strided_slice %17 {offsets = [8, 64], sizes = [8, 32], strides = [1, 1]} : vector<16x96xf32> to vector<8x32xf32>
    %cst_43 = arith.constant 0.000000e+00 : f32
    %110 = vector.broadcast %cst_43 : f32 to vector<8x32xf32>
    %111 = vector.extract_strided_slice %107 {offsets = [0, 0], sizes = [8, 8], strides = [1, 1]} : vector<8x32xf32> to vector<8x8xf32>
    %112 = vector.extract_strided_slice %108 {offsets = [0, 0], sizes = [8, 8], strides = [1, 1]} : vector<8x32xf32> to vector<8x8xf32>
    %113 = vector.extract_strided_slice %109 {offsets = [0, 0], sizes = [8, 8], strides = [1, 1]} : vector<8x32xf32> to vector<8x8xf32>
    %cst_44 = arith.constant dense<0.000000e+00> : vector<8x8xf32>
    %114 = tpu.matmul %111, %112, %cst_44 {dimension_numbers = #tpu.dot_dimension_numbers<[1], [1], [0], [0], [0, 0, 1, 0], [], []>} : vector<8x8xf32>, vector<8x8xf32>, vector<8x8xf32> -> vector<8x8xf32>
    %cst_45 = arith.constant 0.353553385 : f32
    %115 = vector.broadcast %cst_45 : f32 to vector<8x8xf32>
    %116 = arith.mulf %114, %115 : vector<8x8xf32>
    %117 = arith.addf %116, %2 : vector<8x8xf32>
    %cst_46 = arith.constant dense<0xFF800000> : vector<8xf32>
    %118 = vector.multi_reduction <maximumf>, %117, %cst_46 [1] : vector<8x8xf32> to vector<8xf32>
    %119 = vector.shape_cast %118 : vector<8xf32> to vector<8x1xf32>
    %120 = vector.broadcast %119 : vector<8x1xf32> to vector<8x8xf32>
    %121 = arith.subf %117, %120 : vector<8x8xf32>
    %122 = math.exp %121 : vector<8x8xf32>
    %cst_47 = arith.constant dense<0.000000e+00> : vector<8xf32>
    %123 = vector.multi_reduction <add>, %122, %cst_47 [1] : vector<8x8xf32> to vector<8xf32>
    %124 = vector.shape_cast %123 : vector<8xf32> to vector<8x1xf32>
    %125 = tpu.reciprocal %124 : vector<8x1xf32> -> vector<8x1xf32>
    %126 = vector.broadcast %125 : vector<8x1xf32> to vector<8x8xf32>
    %127 = arith.mulf %122, %126 : vector<8x8xf32>
    %cst_48 = arith.constant dense<0.000000e+00> : vector<8x8xf32>
    %128 = tpu.matmul %127, %113, %cst_48 {dimension_numbers = #tpu.dot_dimension_numbers<[1], [0], [0], [1], [0, 0, 1, 1], [], []>} : vector<8x8xf32>, vector<8x8xf32>, vector<8x8xf32> -> vector<8x8xf32>
    %129 = vector.extract_strided_slice %18 {offsets = [0, 0], sizes = [8, 32], strides = [1, 1]} : vector<32x32xf32> to vector<8x32xf32>
    %cst_49 = arith.constant dense<0.000000e+00> : vector<8x32xf32>
    %130 = tpu.matmul %128, %129, %cst_49 {dimension_numbers = #tpu.dot_dimension_numbers<[1], [0], [0], [1], [0, 0, 1, 1], [], []>} : vector<8x8xf32>, vector<8x32xf32>, vector<8x32xf32> -> vector<8x32xf32>
    %131 = arith.addf %110, %130 : vector<8x32xf32>
    %132 = vector.extract_strided_slice %107 {offsets = [0, 8], sizes = [8, 8], strides = [1, 1]} : vector<8x32xf32> to vector<8x8xf32>
    %133 = vector.extract_strided_slice %108 {offsets = [0, 8], sizes = [8, 8], strides = [1, 1]} : vector<8x32xf32> to vector<8x8xf32>
    %134 = vector.extract_strided_slice %109 {offsets = [0, 8], sizes = [8, 8], strides = [1, 1]} : vector<8x32xf32> to vector<8x8xf32>
    %cst_50 = arith.constant dense<0.000000e+00> : vector<8x8xf32>
    %135 = tpu.matmul %132, %133, %cst_50 {dimension_numbers = #tpu.dot_dimension_numbers<[1], [1], [0], [0], [0, 0, 1, 0], [], []>} : vector<8x8xf32>, vector<8x8xf32>, vector<8x8xf32> -> vector<8x8xf32>
    %cst_51 = arith.constant 0.353553385 : f32
    %136 = vector.broadcast %cst_51 : f32 to vector<8x8xf32>
    %137 = arith.mulf %135, %136 : vector<8x8xf32>
    %138 = arith.addf %137, %2 : vector<8x8xf32>
    %cst_52 = arith.constant dense<0xFF800000> : vector<8xf32>
    %139 = vector.multi_reduction <maximumf>, %138, %cst_52 [1] : vector<8x8xf32> to vector<8xf32>
    %140 = vector.shape_cast %139 : vector<8xf32> to vector<8x1xf32>
    %141 = vector.broadcast %140 : vector<8x1xf32> to vector<8x8xf32>
    %142 = arith.subf %138, %141 : vector<8x8xf32>
    %143 = math.exp %142 : vector<8x8xf32>
    %cst_53 = arith.constant dense<0.000000e+00> : vector<8xf32>
    %144 = vector.multi_reduction <add>, %143, %cst_53 [1] : vector<8x8xf32> to vector<8xf32>
    %145 = vector.shape_cast %144 : vector<8xf32> to vector<8x1xf32>
    %146 = tpu.reciprocal %145 : vector<8x1xf32> -> vector<8x1xf32>
    %147 = vector.broadcast %146 : vector<8x1xf32> to vector<8x8xf32>
    %148 = arith.mulf %143, %147 : vector<8x8xf32>
    %cst_54 = arith.constant dense<0.000000e+00> : vector<8x8xf32>
    %149 = tpu.matmul %148, %134, %cst_54 {dimension_numbers = #tpu.dot_dimension_numbers<[1], [0], [0], [1], [0, 0, 1, 1], [], []>} : vector<8x8xf32>, vector<8x8xf32>, vector<8x8xf32> -> vector<8x8xf32>
    %150 = vector.extract_strided_slice %18 {offsets = [8, 0], sizes = [8, 32], strides = [1, 1]} : vector<32x32xf32> to vector<8x32xf32>
    %cst_55 = arith.constant dense<0.000000e+00> : vector<8x32xf32>
    %151 = tpu.matmul %149, %150, %cst_55 {dimension_numbers = #tpu.dot_dimension_numbers<[1], [0], [0], [1], [0, 0, 1, 1], [], []>} : vector<8x8xf32>, vector<8x32xf32>, vector<8x32xf32> -> vector<8x32xf32>
    %152 = arith.addf %131, %151 : vector<8x32xf32>
    %153 = vector.extract_strided_slice %107 {offsets = [0, 16], sizes = [8, 8], strides = [1, 1]} : vector<8x32xf32> to vector<8x8xf32>
    %154 = vector.extract_strided_slice %108 {offsets = [0, 16], sizes = [8, 8], strides = [1, 1]} : vector<8x32xf32> to vector<8x8xf32>
    %155 = vector.extract_strided_slice %109 {offsets = [0, 16], sizes = [8, 8], strides = [1, 1]} : vector<8x32xf32> to vector<8x8xf32>
    %cst_56 = arith.constant dense<0.000000e+00> : vector<8x8xf32>
    %156 = tpu.matmul %153, %154, %cst_56 {dimension_numbers = #tpu.dot_dimension_numbers<[1], [1], [0], [0], [0, 0, 1, 0], [], []>} : vector<8x8xf32>, vector<8x8xf32>, vector<8x8xf32> -> vector<8x8xf32>
    %cst_57 = arith.constant 0.353553385 : f32
    %157 = vector.broadcast %cst_57 : f32 to vector<8x8xf32>
    %158 = arith.mulf %156, %157 : vector<8x8xf32>
    %159 = arith.addf %158, %2 : vector<8x8xf32>
    %cst_58 = arith.constant dense<0xFF800000> : vector<8xf32>
    %160 = vector.multi_reduction <maximumf>, %159, %cst_58 [1] : vector<8x8xf32> to vector<8xf32>
    %161 = vector.shape_cast %160 : vector<8xf32> to vector<8x1xf32>
    %162 = vector.broadcast %161 : vector<8x1xf32> to vector<8x8xf32>
    %163 = arith.subf %159, %162 : vector<8x8xf32>
    %164 = math.exp %163 : vector<8x8xf32>
    %cst_59 = arith.constant dense<0.000000e+00> : vector<8xf32>
    %165 = vector.multi_reduction <add>, %164, %cst_59 [1] : vector<8x8xf32> to vector<8xf32>
    %166 = vector.shape_cast %165 : vector<8xf32> to vector<8x1xf32>
    %167 = tpu.reciprocal %166 : vector<8x1xf32> -> vector<8x1xf32>
    %168 = vector.broadcast %167 : vector<8x1xf32> to vector<8x8xf32>
    %169 = arith.mulf %164, %168 : vector<8x8xf32>
    %cst_60 = arith.constant dense<0.000000e+00> : vector<8x8xf32>
    %170 = tpu.matmul %169, %155, %cst_60 {dimension_numbers = #tpu.dot_dimension_numbers<[1], [0], [0], [1], [0, 0, 1, 1], [], []>} : vector<8x8xf32>, vector<8x8xf32>, vector<8x8xf32> -> vector<8x8xf32>
    %171 = vector.extract_strided_slice %18 {offsets = [16, 0], sizes = [8, 32], strides = [1, 1]} : vector<32x32xf32> to vector<8x32xf32>
    %cst_61 = arith.constant dense<0.000000e+00> : vector<8x32xf32>
    %172 = tpu.matmul %170, %171, %cst_61 {dimension_numbers = #tpu.dot_dimension_numbers<[1], [0], [0], [1], [0, 0, 1, 1], [], []>} : vector<8x8xf32>, vector<8x32xf32>, vector<8x32xf32> -> vector<8x32xf32>
    %173 = arith.addf %152, %172 : vector<8x32xf32>
    %174 = vector.extract_strided_slice %107 {offsets = [0, 24], sizes = [8, 8], strides = [1, 1]} : vector<8x32xf32> to vector<8x8xf32>
    %175 = vector.extract_strided_slice %108 {offsets = [0, 24], sizes = [8, 8], strides = [1, 1]} : vector<8x32xf32> to vector<8x8xf32>
    %176 = vector.extract_strided_slice %109 {offsets = [0, 24], sizes = [8, 8], strides = [1, 1]} : vector<8x32xf32> to vector<8x8xf32>
    %cst_62 = arith.constant dense<0.000000e+00> : vector<8x8xf32>
    %177 = tpu.matmul %174, %175, %cst_62 {dimension_numbers = #tpu.dot_dimension_numbers<[1], [1], [0], [0], [0, 0, 1, 0], [], []>} : vector<8x8xf32>, vector<8x8xf32>, vector<8x8xf32> -> vector<8x8xf32>
    %cst_63 = arith.constant 0.353553385 : f32
    %178 = vector.broadcast %cst_63 : f32 to vector<8x8xf32>
    %179 = arith.mulf %177, %178 : vector<8x8xf32>
    %180 = arith.addf %179, %2 : vector<8x8xf32>
    %cst_64 = arith.constant dense<0xFF800000> : vector<8xf32>
    %181 = vector.multi_reduction <maximumf>, %180, %cst_64 [1] : vector<8x8xf32> to vector<8xf32>
    %182 = vector.shape_cast %181 : vector<8xf32> to vector<8x1xf32>
    %183 = vector.broadcast %182 : vector<8x1xf32> to vector<8x8xf32>
    %184 = arith.subf %180, %183 : vector<8x8xf32>
    %185 = math.exp %184 : vector<8x8xf32>
    %cst_65 = arith.constant dense<0.000000e+00> : vector<8xf32>
    %186 = vector.multi_reduction <add>, %185, %cst_65 [1] : vector<8x8xf32> to vector<8xf32>
    %187 = vector.shape_cast %186 : vector<8xf32> to vector<8x1xf32>
    %188 = tpu.reciprocal %187 : vector<8x1xf32> -> vector<8x1xf32>
    %189 = vector.broadcast %188 : vector<8x1xf32> to vector<8x8xf32>
    %190 = arith.mulf %185, %189 : vector<8x8xf32>
    %cst_66 = arith.constant dense<0.000000e+00> : vector<8x8xf32>
    %191 = tpu.matmul %190, %176, %cst_66 {dimension_numbers = #tpu.dot_dimension_numbers<[1], [0], [0], [1], [0, 0, 1, 1], [], []>} : vector<8x8xf32>, vector<8x8xf32>, vector<8x8xf32> -> vector<8x8xf32>
    %192 = vector.extract_strided_slice %18 {offsets = [24, 0], sizes = [8, 32], strides = [1, 1]} : vector<32x32xf32> to vector<8x32xf32>
    %cst_67 = arith.constant dense<0.000000e+00> : vector<8x32xf32>
    %193 = tpu.matmul %191, %192, %cst_67 {dimension_numbers = #tpu.dot_dimension_numbers<[1], [0], [0], [1], [0, 0, 1, 1], [], []>} : vector<8x8xf32>, vector<8x32xf32>, vector<8x32xf32> -> vector<8x32xf32>
    %194 = arith.addf %173, %193 : vector<8x32xf32>
    %195 = tpu.concatenate %106, %194 in 0 : vector<8x32xf32>, vector<8x32xf32> -> vector<16x32xf32>
    %c0_68 = arith.constant 0 : index
    %c0_69 = arith.constant 0 : index
    %196 = vector.load %arg9[%c0_68, %c0_69] : memref<1x32xf32, #tpu.memory_space<vmem>>, vector<1x32xf32>
    %197 = vector.broadcast %196 : vector<1x32xf32> to vector<16x32xf32>
    %198 = arith.addf %195, %197 : vector<16x32xf32>
    %199 = arith.addf %12, %198 : vector<16x32xf32>
    %cst_70 = arith.constant dense<0.000000e+00> : vector<16xf32>
    %200 = vector.multi_reduction <add>, %199, %cst_70 [1] : vector<16x32xf32> to vector<16xf32>
    %201 = vector.shape_cast %200 : vector<16xf32> to vector<16x1xf32>
    %cst_71 = arith.constant 3.200000e+01 : f32
    %202 = vector.broadcast %cst_71 : f32 to vector<16x1xf32>
    %203 = arith.divf %201, %202 : vector<16x1xf32>
    %204 = vector.broadcast %203 : vector<16x1xf32> to vector<16x32xf32>
    %205 = arith.subf %199, %204 : vector<16x32xf32>
    %206 = arith.mulf %205, %205 : vector<16x32xf32>
    %cst_72 = arith.constant dense<0.000000e+00> : vector<16xf32>
    %207 = vector.multi_reduction <add>, %206, %cst_72 [1] : vector<16x32xf32> to vector<16xf32>
    %208 = vector.shape_cast %207 : vector<16xf32> to vector<16x1xf32>
    %cst_73 = arith.constant 3.200000e+01 : f32
    %209 = vector.broadcast %cst_73 : f32 to vector<16x1xf32>
    %210 = arith.divf %208, %209 : vector<16x1xf32>
    %211 = vector.broadcast %203 : vector<16x1xf32> to vector<16x32xf32>
    %212 = arith.subf %199, %211 : vector<16x32xf32>
    %cst_74 = arith.constant 9.99999974E-6 : f32
    %213 = vector.broadcast %cst_74 : f32 to vector<16x1xf32>
    %214 = arith.addf %210, %213 : vector<16x1xf32>
    %215 = math.rsqrt %214 : vector<16x1xf32>
    %216 = vector.broadcast %215 : vector<16x1xf32> to vector<16x32xf32>
    %217 = arith.mulf %212, %216 : vector<16x32xf32>
    %c0_75 = arith.constant 0 : index
    %c0_76 = arith.constant 0 : index
    %218 = vector.load %arg10[%c0_75, %c0_76] : memref<1x32xf32, #tpu.memory_space<vmem>>, vector<1x32xf32>
    %219 = vector.broadcast %218 : vector<1x32xf32> to vector<16x32xf32>
    %220 = arith.mulf %217, %219 : vector<16x32xf32>
    %c0_77 = arith.constant 0 : index
    %c0_78 = arith.constant 0 : index
    %221 = vector.load %arg11[%c0_77, %c0_78] : memref<1x32xf32, #tpu.memory_space<vmem>>, vector<1x32xf32>
    %222 = vector.broadcast %221 : vector<1x32xf32> to vector<16x32xf32>
    %223 = arith.addf %220, %222 : vector<16x32xf32>
    %c0_79 = arith.constant 0 : index
    %c0_80 = arith.constant 0 : index
    %224 = vector.load %arg12[%c0_79, %c0_80] : memref<32x64xf32, #tpu.memory_space<vmem>>, vector<32x64xf32>
    %cst_81 = arith.constant dense<0.000000e+00> : vector<16x64xf32>
    %225 = tpu.matmul %223, %224, %cst_81 {dimension_numbers = #tpu.dot_dimension_numbers<[1], [0], [0], [1], [0, 0, 1, 1], [], []>} : vector<16x32xf32>, vector<32x64xf32>, vector<16x64xf32> -> vector<16x64xf32>
    %c0_82 = arith.constant 0 : index
    %c0_83 = arith.constant 0 : index
    %226 = vector.load %arg13[%c0_82, %c0_83] : memref<1x64xf32, #tpu.memory_space<vmem>>, vector<1x64xf32>
    %227 = vector.broadcast %226 : vector<1x64xf32> to vector<16x64xf32>
    %228 = arith.addf %225, %227 : vector<16x64xf32>
    %cst_84 = arith.constant 0.000000e+00 : f32
    %229 = vector.broadcast %cst_84 : f32 to vector<16x64xf32>
    %230 = arith.maximumf %228, %229 : vector<16x64xf32>
    %c0_85 = arith.constant 0 : index
    %c0_86 = arith.constant 0 : index
    %231 = vector.load %arg14[%c0_85, %c0_86] : memref<64x32xf32, #tpu.memory_space<vmem>>, vector<64x32xf32>
    %cst_87 = arith.constant dense<0.000000e+00> : vector<16x32xf32>
    %232 = tpu.matmul %230, %231, %cst_87 {dimension_numbers = #tpu.dot_dimension_numbers<[1], [0], [0], [1], [0, 0, 1, 1], [], []>} : vector<16x64xf32>, vector<64x32xf32>, vector<16x32xf32> -> vector<16x32xf32>
    %c0_88 = arith.constant 0 : index
    %c0_89 = arith.constant 0 : index
    %233 = vector.load %arg15[%c0_88, %c0_89] : memref<1x32xf32, #tpu.memory_space<vmem>>, vector<1x32xf32>
    %234 = vector.broadcast %233 : vector<1x32xf32> to vector<16x32xf32>
    %235 = arith.addf %232, %234 : vector<16x32xf32>
    %236 = arith.addf %223, %235 : vector<16x32xf32>
    %cst_90 = arith.constant dense<0.000000e+00> : vector<16xf32>
    %237 = vector.multi_reduction <add>, %236, %cst_90 [1] : vector<16x32xf32> to vector<16xf32>
    %238 = vector.shape_cast %237 : vector<16xf32> to vector<16x1xf32>
    %cst_91 = arith.constant 3.200000e+01 : f32
    %239 = vector.broadcast %cst_91 : f32 to vector<16x1xf32>
    %240 = arith.divf %238, %239 : vector<16x1xf32>
    %241 = vector.broadcast %240 : vector<16x1xf32> to vector<16x32xf32>
    %242 = arith.subf %236, %241 : vector<16x32xf32>
    %243 = arith.mulf %242, %242 : vector<16x32xf32>
    %cst_92 = arith.constant dense<0.000000e+00> : vector<16xf32>
    %244 = vector.multi_reduction <add>, %243, %cst_92 [1] : vector<16x32xf32> to vector<16xf32>
    %245 = vector.shape_cast %244 : vector<16xf32> to vector<16x1xf32>
    %cst_93 = arith.constant 3.200000e+01 : f32
    %246 = vector.broadcast %cst_93 : f32 to vector<16x1xf32>
    %247 = arith.divf %245, %246 : vector<16x1xf32>
    %248 = vector.broadcast %240 : vector<16x1xf32> to vector<16x32xf32>
    %249 = arith.subf %236, %248 : vector<16x32xf32>
    %cst_94 = arith.constant 9.99999974E-6 : f32
    %250 = vector.broadcast %cst_94 : f32 to vector<16x1xf32>
    %251 = arith.addf %247, %250 : vector<16x1xf32>
    %252 = math.rsqrt %251 : vector<16x1xf32>
    %253 = vector.broadcast %252 : vector<16x1xf32> to vector<16x32xf32>
    %254 = arith.mulf %249, %253 : vector<16x32xf32>
    %c0_95 = arith.constant 0 : index
    %c0_96 = arith.constant 0 : index
    %255 = vector.load %arg16[%c0_95, %c0_96] : memref<1x32xf32, #tpu.memory_space<vmem>>, vector<1x32xf32>
    %256 = vector.broadcast %255 : vector<1x32xf32> to vector<16x32xf32>
    %257 = arith.mulf %254, %256 : vector<16x32xf32>
    %c0_97 = arith.constant 0 : index
    %c0_98 = arith.constant 0 : index
    %258 = vector.load %arg17[%c0_97, %c0_98] : memref<1x32xf32, #tpu.memory_space<vmem>>, vector<1x32xf32>
    %259 = vector.broadcast %258 : vector<1x32xf32> to vector<16x32xf32>
    %260 = arith.addf %257, %259 : vector<16x32xf32>
    %c0_99 = arith.constant 0 : index
    %c0_100 = arith.constant 0 : index
    %261 = vector.load %arg18[%c0_99, %c0_100] : memref<16x32xf32, #tpu.memory_space<vmem>>, vector<16x32xf32>
    tpu.vector_store %arg18[%c0_99, %c0_100], %260 {strides = array<i32>} : memref<16x32xf32, #tpu.memory_space<vmem>>, vector<16x32xf32>,
    return
  }
}

</mosaic_0001>

<llo_original>
// kernel: _pe_encoder.1
$region0: #{_pe_encoder.1}
  #allocation0 [shape = 'u32[]', space=smem, size = 0x4, offset = 0x4, fixed_abs, tag = 'smem constant byte address 0x4 - core index']
  #allocation1 [shape = 'u32[144,128]{1,0:T(1,128)}', space=vmem, size = 0x12000, scoped, tag = 'internal scratch']
  #allocation2 [shape = 'f32[1,1]{1,0:T(1,128)S(6)}', space=smem, size = 0x200, scoped, tag = 'scoped memory for _pe_encoder.1']
  %s0 = inlined_call_operand.<no memory space> [shape: f32[1,1], index: 0, kind: input, shape index: {}]
  %s1 = inlined_call_operand.vmem [shape: f32[16,32], index: 1, kind: input, shape index: {}]
  %s2 = inlined_call_operand.vmem [shape: f32[16,32], index: 2, kind: input, shape index: {}]
  %s3 = inlined_call_operand.vmem [shape: f32[8,8], index: 3, kind: input, shape index: {}]
  %s4 = inlined_call_operand.vmem [shape: f32[32,32], index: 4, kind: input, shape index: {}]
  %s5 = inlined_call_operand.vmem [shape: f32[1,32], index: 5, kind: input, shape index: {}]
  %s6 = inlined_call_operand.vmem [shape: f32[32,96], index: 6, kind: input, shape index: {}]
  %s7 = inlined_call_operand.vmem [shape: f32[1,96], index: 7, kind: input, shape index: {}]
  %s8 = inlined_call_operand.vmem [shape: f32[32,32], index: 8, kind: input, shape index: {}]
  %s9 = inlined_call_operand.vmem [shape: f32[1,32], index: 9, kind: input, shape index: {}]
  %s10 = inlined_call_operand.vmem [shape: f32[1,32], index: 10, kind: input, shape index: {}]
  %s11 = inlined_call_operand.vmem [shape: f32[1,32], index: 11, kind: input, shape index: {}]
  %s12 = inlined_call_operand.vmem [shape: f32[32,64], index: 12, kind: input, shape index: {}]
  %s13 = inlined_call_operand.vmem [shape: f32[1,64], index: 13, kind: input, shape index: {}]
  %s14 = inlined_call_operand.vmem [shape: f32[64,32], index: 14, kind: input, shape index: {}]
  %s15 = inlined_call_operand.vmem [shape: f32[1,32], index: 15, kind: input, shape index: {}]
  %s16 = inlined_call_operand.vmem [shape: f32[1,32], index: 16, kind: input, shape index: {}]
  %s17 = inlined_call_operand.vmem [shape: f32[1,32], index: 17, kind: input, shape index: {}]
  %s18 = inlined_call_operand.hbm [shape: f32[16,32], index: 18, kind: output, shape index: {}]
  %s19 = sld [smem:[#allocation0]]
  $region82: #{_pe_encoder.1} parent=0
    _
  %s21 = ssub.s32 1, %s19
  %s22 = scalar_select 0, %s21, %s19
  %23 = sst [smem:[#allocation2]] %s0
  $region1: #{_pe_encoder.1} parent=0
    #allocation3 [shape = 'u8[8192]{0}', space=vmem, size = 0x2000, scoped, tag = 'output window, operand 0, single buffered']
    #allocation4 [shape = 's32[1]{0}', space=sflag, size = 0x4, scoped, tag = 'scoped memory for _pe_encoder.1']
    %24 = vsyncpa [#allocation4], 0
    // Predicated region
    $region2: #{_pe_encoder.1} parent=1 // pred_check
      _
    $region3: #{_pe_encoder.1} parent=1 // pred_check_branch
      %26 = sbr.rel (0) target = $region5
    $region4: #{_pe_encoder.1} parent=1 // pred_region
      _
    $region5: #{_pe_encoder.1} parent=1 // pred_fallthru
      _
    // Predicated region
    $region6: #{_pe_encoder.1} parent=1 // pred_check
      _
    $region7: #{_pe_encoder.1} parent=1 // pred_check_branch
      %28 = sbr.rel (0) target = $region9
    $region8: #{_pe_encoder.1} parent=1 // pred_region
      _
    $region9: #{_pe_encoder.1} parent=1 // pred_fallthru
      _
    // Predicated region
    $region10: #{_pe_encoder.1} parent=1 // pred_check
      _
    $region11: #{_pe_encoder.1} parent=1 // pred_check_branch
      %30 = sbr.rel (0) target = $region13
    $region12: #{_pe_encoder.1} parent=1 // pred_region
      _
    $region13: #{_pe_encoder.1} parent=1 // pred_fallthru
      _
    // Predicated region
    $region14: #{_pe_encoder.1} parent=1 // pred_check
      _
    $region15: #{_pe_encoder.1} parent=1 // pred_check_branch
      %32 = sbr.rel (0) target = $region17
    $region16: #{_pe_encoder.1} parent=1 // pred_region
      _
    $region17: #{_pe_encoder.1} parent=1 // pred_fallthru
      _
    // Predicated region
    $region18: #{_pe_encoder.1} parent=1 // pred_check
      _
    $region19: #{_pe_encoder.1} parent=1 // pred_check_branch
      %34 = sbr.rel (0) target = $region21
    $region20: #{_pe_encoder.1} parent=1 // pred_region
      _
    $region21: #{_pe_encoder.1} parent=1 // pred_fallthru
      _
    // Predicated region
    $region22: #{_pe_encoder.1} parent=1 // pred_check
      _
    $region23: #{_pe_encoder.1} parent=1 // pred_check_branch
      %36 = sbr.rel (0) target = $region25
    $region24: #{_pe_encoder.1} parent=1 // pred_region
      _
    $region25: #{_pe_encoder.1} parent=1 // pred_fallthru
      _
    // Predicated region
    $region26: #{_pe_encoder.1} parent=1 // pred_check
      _
    $region27: #{_pe_encoder.1} parent=1 // pred_check_branch
      %38 = sbr.rel (0) target = $region29
    $region28: #{_pe_encoder.1} parent=1 // pred_region
      _
    $region29: #{_pe_encoder.1} parent=1 // pred_fallthru
      _
    // Predicated region
    $region30: #{_pe_encoder.1} parent=1 // pred_check
      _
    $region31: #{_pe_encoder.1} parent=1 // pred_check_branch
      %40 = sbr.rel (0) target = $region33
    $region32: #{_pe_encoder.1} parent=1 // pred_region
      _
    $region33: #{_pe_encoder.1} parent=1 // pred_fallthru
      _
    // Predicated region
    $region34: #{_pe_encoder.1} parent=1 // pred_check
      _
    $region35: #{_pe_encoder.1} parent=1 // pred_check_branch
      %42 = sbr.rel (0) target = $region37
    $region36: #{_pe_encoder.1} parent=1 // pred_region
      _
    $region37: #{_pe_encoder.1} parent=1 // pred_fallthru
      _
    // Predicated region
    $region38: #{_pe_encoder.1} parent=1 // pred_check
      _
    $region39: #{_pe_encoder.1} parent=1 // pred_check_branch
      %44 = sbr.rel (0) target = $region41
    $region40: #{_pe_encoder.1} parent=1 // pred_region
      _
    $region41: #{_pe_encoder.1} parent=1 // pred_fallthru
      _
    // Predicated region
    $region42: #{_pe_encoder.1} parent=1 // pred_check
      _
    $region43: #{_pe_encoder.1} parent=1 // pred_check_branch
      %46 = sbr.rel (0) target = $region45
    $region44: #{_pe_encoder.1} parent=1 // pred_region
      _
    $region45: #{_pe_encoder.1} parent=1 // pred_fallthru
      _
    // Predicated region
    $region46: #{_pe_encoder.1} parent=1 // pred_check
      _
    $region47: #{_pe_encoder.1} parent=1 // pred_check_branch
      %48 = sbr.rel (0) target = $region49
    $region48: #{_pe_encoder.1} parent=1 // pred_region
      _
    $region49: #{_pe_encoder.1} parent=1 // pred_fallthru
      _
    // Predicated region
    $region50: #{_pe_encoder.1} parent=1 // pred_check
      _
    $region51: #{_pe_encoder.1} parent=1 // pred_check_branch
      %50 = sbr.rel (0) target = $region53
    $region52: #{_pe_encoder.1} parent=1 // pred_region
      _
    $region53: #{_pe_encoder.1} parent=1 // pred_fallthru
      _
    // Predicated region
    $region54: #{_pe_encoder.1} parent=1 // pred_check
      _
    $region55: #{_pe_encoder.1} parent=1 // pred_check_branch
      %52 = sbr.rel (0) target = $region57
    $region56: #{_pe_encoder.1} parent=1 // pred_region
      _
    $region57: #{_pe_encoder.1} parent=1 // pred_fallthru
      _
    // Predicated region
    $region58: #{_pe_encoder.1} parent=1 // pred_check
      _
    $region59: #{_pe_encoder.1} parent=1 // pred_check_branch
      %54 = sbr.rel (0) target = $region61
    $region60: #{_pe_encoder.1} parent=1 // pred_region
      _
    $region61: #{_pe_encoder.1} parent=1 // pred_fallthru
      _
    // Predicated region
    $region62: #{_pe_encoder.1} parent=1 // pred_check
      _
    $region63: #{_pe_encoder.1} parent=1 // pred_check_branch
      %56 = sbr.rel (0) target = $region65
    $region64: #{_pe_encoder.1} parent=1 // pred_region
      _
    $region65: #{_pe_encoder.1} parent=1 // pred_fallthru
      _
    // Predicated region
    $region66: #{_pe_encoder.1} parent=1 // pred_check
      _
    $region67: #{_pe_encoder.1} parent=1 // pred_check_branch
      %58 = sbr.rel (0) target = $region69
    $region68: #{_pe_encoder.1} parent=1 // pred_region
      _
    $region69: #{_pe_encoder.1} parent=1 // pred_fallthru
      _
    // Predicated region
    $region70: #{_pe_encoder.1} parent=1 // pred_check
      _
    $region71: #{_pe_encoder.1} parent=1 // pred_check_branch
      %60 = sbr.rel (0) target = $region73
    $region72: #{_pe_encoder.1} parent=1 // pred_region
      _
    $region73: #{_pe_encoder.1} parent=1 // pred_fallthru
      _
    %v61 = vld [vmem:[%s1] sm:$0xff]
    %v62 = vld [vmem:[%s1 + $0x8] sm:$0xff]
    %v63 = vld [vmem:[%s2] sm:$0xff]
    %v64 = vld [vmem:[%s2 + $0x8] sm:$0xff]
    %v65 = vld [vmem:[%s3] sm:$0xff]
    %s66 = sld [smem:[#allocation2]]
    %v67 = vld [vmem:[%s4] sm:$0xff]
    %v68 = vld [vmem:[%s4 + $0x8] sm:$0xff]
    %v69 = vld [vmem:[%s4 + $0x10] sm:$0xff]
    %v70 = vld [vmem:[%s4 + $0x18] sm:$0xff]
    %v71 = vld [vmem:[%s5] sm:$0x1]
    %v73 = vlaneseq
    %v74 = vshrl.u32 %v73, 7
    %v75 = vsub.s32 0, %v74
    %v76 = vrot.slane %v71, %v75
    %vm78 = vcmask 261120
    %v80 = vsel %vm78, %v61, 0
    %v83 = vsel %vm78, %v62, 0
    %85 = vmatprep.subr.mxu0 0.0
    %86 = vmatpush1.msra.mxu0 0.0
    %87 = vmatprep.subr.mxu0 0.0
    %88 = vmatpush1.msra.mxu0 0.0
    %89 = vmatprep.subr.mxu0 0.0
    %90 = vmatpush1.msra.mxu0 0.0
    %91 = vmatprep.subr.mxu0 0.0
    %92 = vmatpush1.msra.mxu0 0.0
    %93 = vmatprep.subr.mxu0 0.0
    %94 = vmatpush1.msra.mxu0 0.0
    %95 = vmatprep.subr.mxu0 0.0
    %96 = vmatpush1.msra.mxu0 0.0
    %97 = vmatprep.subr.mxu0 0.0
    %98 = vmatpush1.msra.mxu0 0.0
    %99 = vmatprep.subr.mxu0 0.0
    %100 = vmatpush1.msra.mxu0 0.0
    %101 = vmatprep.subr.mxu0 0.0
    %102 = vmatpush1.msra.mxu0 0.0
    %103 = vmatprep.subr.mxu0 0.0
    %104 = vmatpush1.msra.mxu0 0.0
    %105 = vmatprep.subr.mxu0 0.0
    %106 = vmatpush1.msra.mxu0 0.0
    %107 = vmatprep.subr.mxu0 0.0
    %108 = vmatpush1.msra.mxu0 0.0
    %109 = vmatprep.subr.mxu0 0.0
    %110 = vmatpush1.msra.mxu0 %v70
    %111 = vmatprep.subr.mxu0 0.0
    %112 = vmatpush1.msra.mxu0 %v69
    %113 = vmatprep.subr.mxu0 0.0
    %114 = vmatpush1.msra.mxu0 %v68
    %115 = vmatprep.subr.mxu0 0.0
    %116 = vmatpush1.msra.mxu0 %v67
    %117 = vmatprep.subr.mxu0 0.0
    %118 = vmatpush2.msra.mxu0 0.0
    %119 = vmatprep.subr.mxu0 0.0
    %120 = vmatpush2.msra.mxu0 0.0
    %121 = vmatprep.subr.mxu0 0.0
    %122 = vmatpush2.msra.mxu0 0.0
    %123 = vmatprep.subr.mxu0 0.0
    %124 = vmatpush2.msra.mxu0 0.0
    %125 = vmatprep.subr.mxu0 0.0
    %126 = vmatpush2.msra.mxu0 0.0
    %127 = vmatprep.subr.mxu0 0.0
    %128 = vmatpush2.msra.mxu0 0.0
    %129 = vmatprep.subr.mxu0 0.0
    %130 = vmatpush2.msra.mxu0 0.0
    %131 = vmatprep.subr.mxu0 0.0
    %132 = vmatpush2.msra.mxu0 0.0
    %133 = vmatprep.subr.mxu0 0.0
    %134 = vmatpush2.msra.mxu0 0.0
    %135 = vmatprep.subr.mxu0 0.0
    %136 = vmatpush2.msra.mxu0 0.0
    %137 = vmatprep.subr.mxu0 0.0
    %138 = vmatpush2.msra.mxu0 0.0
    %139 = vmatprep.subr.mxu0 0.0
    %140 = vmatpush2.msra.mxu0 0.0
    %141 = vmatprep.subr.mxu0 0.0
    %142 = vmatpush2.msra.mxu0 0.0
    %143 = vmatprep.subr.mxu0 0.0
    %144 = vmatpush2.msra.mxu0 0.0
    %145 = vmatprep.subr.mxu0 0.0
    %146 = vmatpush2.msra.mxu0 0.0
    %147 = vmatprep.subr.mxu0 0.0
    %148 = vmatpush2.msra.mxu0 0.0
    %149 = vmatprep.mubr.f32.mxu0 0.0
    %150 = vmatmul.mubr.f32.gmra.mxu0 %v80
    %v151 = vpop.f32.mrf.mxu0
    %v152 = vadd.f32 %v76, %v151
    %v153 = vpop.f32.mrf.mxu0
    %154 = vmatprep.mubr.f32.mxu0 0.0
    %155 = vmatmul.mubr.f32.gmra.mxu0 %v83
    %v156 = vpop.f32.mrf.mxu0
    %v157 = vadd.f32 %v76, %v156
    %v158 = vpop.f32.mrf.mxu0
    %159 = vdwg.mxu0
    %v160 = vadd.f32 %v152, %v61
    %v161 = vadd.f32 %v157, %v62
    %v162 = vstv %s66
    %v163 = vmul.f32 %v160, %v162
    %v164 = vmul.f32 %v161, %v162
    %v165 = vadd.f32 %v163, %v63
    %v166 = vadd.f32 %v164, %v64
    %v167 = vld [vmem:[%s6] sm:$0xff]
    %v168 = vld [vmem:[%s6 + $0x8] sm:$0xff]
    %v169 = vld [vmem:[%s6 + $0x10] sm:$0xff]
    %v170 = vld [vmem:[%s6 + $0x18] sm:$0xff]
    %v171 = vld [vmem:[%s7] sm:$0x1]
    %v173 = vlaneseq
    %v174 = vshrl.u32 %v173, 7
    %v175 = vsub.s32 0, %v174
    %v176 = vrot.slane %v171, %v175
    %v179 = vsel %vm78, %v165, 0
    %v182 = vsel %vm78, %v166, 0
    %184 = vmatprep.subr.mxu0 0.0
    %185 = vmatpush1.msra.mxu0 0.0
    %186 = vmatprep.subr.mxu0 0.0
    %187 = vmatpush1.msra.mxu0 0.0
    %188 = vmatprep.subr.mxu0 0.0
    %189 = vmatpush1.msra.mxu0 0.0
    %190 = vmatprep.subr.mxu0 0.0
    %191 = vmatpush1.msra.mxu0 0.0
    %192 = vmatprep.subr.mxu0 0.0
    %193 = vmatpush1.msra.mxu0 0.0
    %194 = vmatprep.subr.mxu0 0.0
    %195 = vmatpush1.msra.mxu0 0.0
    %196 = vmatprep.subr.mxu0 0.0
    %197 = vmatpush1.msra.mxu0 0.0
    %198 = vmatprep.subr.mxu0 0.0
    %199 = vmatpush1.msra.mxu0 0.0
    %200 = vmatprep.subr.mxu0 0.0
    %201 = vmatpush1.msra.mxu0 0.0
    %202 = vmatprep.subr.mxu0 0.0
    %203 = vmatpush1.msra.mxu0 0.0
    %204 = vmatprep.subr.mxu0 0.0
    %205 = vmatpush1.msra.mxu0 0.0
    %206 = vmatprep.subr.mxu0 0.0
    %207 = vmatpush1.msra.mxu0 0.0
    %208 = vmatprep.subr.mxu0 0.0
    %209 = vmatpush1.msra.mxu0 %v170
    %210 = vmatprep.subr.mxu0 0.0
    %211 = vmatpush1.msra.mxu0 %v169
    %212 = vmatprep.subr.mxu0 0.0
    %213 = vmatpush1.msra.mxu0 %v168
    %214 = vmatprep.subr.mxu0 0.0
    %215 = vmatpush1.msra.mxu0 %v167
    %216 = vmatprep.subr.mxu0 0.0
    %217 = vmatpush2.msra.mxu0 0.0
    %218 = vmatprep.subr.mxu0 0.0
    %219 = vmatpush2.msra.mxu0 0.0
    %220 = vmatprep.subr.mxu0 0.0
    %221 = vmatpush2.msra.mxu0 0.0
    %222 = vmatprep.subr.mxu0 0.0
    %223 = vmatpush2.msra.mxu0 0.0
    %224 = vmatprep.subr.mxu0 0.0
    %225 = vmatpush2.msra.mxu0 0.0
    %226 = vmatprep.subr.mxu0 0.0
    %227 = vmatpush2.msra.mxu0 0.0
    %228 = vmatprep.subr.mxu0 0.0
    %229 = vmatpush2.msra.mxu0 0.0
    %230 = vmatprep.subr.mxu0 0.0
    %231 = vmatpush2.msra.mxu0 0.0
    %232 = vmatprep.subr.mxu0 0.0
    %233 = vmatpush2.msra.mxu0 0.0
    %234 = vmatprep.subr.mxu0 0.0
    %235 = vmatpush2.msra.mxu0 0.0
    %236 = vmatprep.subr.mxu0 0.0
    %237 = vmatpush2.msra.mxu0 0.0
    %238 = vmatprep.subr.mxu0 0.0
    %239 = vmatpush2.msra.mxu0 0.0
    %240 = vmatprep.subr.mxu0 0.0
    %241 = vmatpush2.msra.mxu0 0.0
    %242 = vmatprep.subr.mxu0 0.0
    %243 = vmatpush2.msra.mxu0 0.0
    %244 = vmatprep.subr.mxu0 0.0
    %245 = vmatpush2.msra.mxu0 0.0
    %246 = vmatprep.subr.mxu0 0.0
    %247 = vmatpush2.msra.mxu0 0.0
    %248 = vmatprep.mubr.f32.mxu0 0.0
    %249 = vmatmul.mubr.f32.gmra.mxu0 %v179
    %v250 = vpop.f32.mrf.mxu0
    %v251 = vadd.f32 %v176, %v250
    %v252 = vpop.f32.mrf.mxu0
    %253 = vmatprep.mubr.f32.mxu0 0.0
    %254 = vmatmul.mubr.f32.gmra.mxu0 %v182
    %v255 = vpop.f32.mrf.mxu0
    %v256 = vadd.f32 %v176, %v255
    %v257 = vpop.f32.mrf.mxu0
    %258 = vdwg.mxu0
    %v259 = vld [vmem:[%s8] sm:$0xff]
    %v260 = vld [vmem:[%s8 + $0x8] sm:$0xff]
    %v261 = vld [vmem:[%s8 + $0x10] sm:$0xff]
    %v262 = vld [vmem:[%s8 + $0x18] sm:$0xff]
    %264 = vrot.lane.b32.xlu0 %v251, 96
    %v265 = vpop.permute.xlu0 %264
    %vm266 = vcmask 64512
    %v267 = vsel %vm266, %v251, 0
    %v269 = vsel %vm266, %v265, 0
    %271 = vmatprep.subr.mxu0 0.0
    %272 = vmatpush1.xpose.msra.mxu0 0.0
    %273 = vmatprep.subr.mxu0 0.0
    %274 = vmatpush1.xpose.msra.mxu0 0.0
    %275 = vmatprep.subr.mxu0 0.0
    %276 = vmatpush1.xpose.msra.mxu0 0.0
    %277 = vmatprep.subr.mxu0 0.0
    %278 = vmatpush1.xpose.msra.mxu0 0.0
    %279 = vmatprep.subr.mxu0 0.0
    %280 = vmatpush1.xpose.msra.mxu0 0.0
    %281 = vmatprep.subr.mxu0 0.0
    %282 = vmatpush1.xpose.msra.mxu0 0.0
    %283 = vmatprep.subr.mxu0 0.0
    %284 = vmatpush1.xpose.msra.mxu0 0.0
    %285 = vmatprep.subr.mxu0 0.0
    %286 = vmatpush1.xpose.msra.mxu0 0.0
    %287 = vmatprep.subr.mxu0 0.0
    %288 = vmatpush1.xpose.msra.mxu0 0.0
    %289 = vmatprep.subr.mxu0 0.0
    %290 = vmatpush1.xpose.msra.mxu0 0.0
    %291 = vmatprep.subr.mxu0 0.0
    %292 = vmatpush1.xpose.msra.mxu0 0.0
    %293 = vmatprep.subr.mxu0 0.0
    %294 = vmatpush1.xpose.msra.mxu0 0.0
    %295 = vmatprep.subr.mxu0 0.0
    %296 = vmatpush1.xpose.msra.mxu0 0.0
    %297 = vmatprep.subr.mxu0 0.0
    %298 = vmatpush1.xpose.msra.mxu0 0.0
    %299 = vmatprep.subr.mxu0 0.0
    %300 = vmatpush1.xpose.msra.mxu0 0.0
    %301 = vmatprep.subr.mxu0 0.0
    %302 = vmatpush1.xpose.msra.mxu0 %v269
    %303 = vmatprep.subr.mxu0 0.0
    %304 = vmatpush2.xpose.msra.mxu0 0.0
    %305 = vmatprep.subr.mxu0 0.0
    %306 = vmatpush2.xpose.msra.mxu0 0.0
    %307 = vmatprep.subr.mxu0 0.0
    %308 = vmatpush2.xpose.msra.mxu0 0.0
    %309 = vmatprep.subr.mxu0 0.0
    %310 = vmatpush2.xpose.msra.mxu0 0.0
    %311 = vmatprep.subr.mxu0 0.0
    %312 = vmatpush2.xpose.msra.mxu0 0.0
    %313 = vmatprep.subr.mxu0 0.0
    %314 = vmatpush2.xpose.msra.mxu0 0.0
    %315 = vmatprep.subr.mxu0 0.0
    %316 = vmatpush2.xpose.msra.mxu0 0.0
    %317 = vmatprep.subr.mxu0 0.0
    %318 = vmatpush2.xpose.msra.mxu0 0.0
    %319 = vmatprep.subr.mxu0 0.0
    %320 = vmatpush2.xpose.msra.mxu0 0.0
    %321 = vmatprep.subr.mxu0 0.0
    %322 = vmatpush2.xpose.msra.mxu0 0.0
    %323 = vmatprep.subr.mxu0 0.0
    %324 = vmatpush2.xpose.msra.mxu0 0.0
    %325 = vmatprep.subr.mxu0 0.0
    %326 = vmatpush2.xpose.msra.mxu0 0.0
    %327 = vmatprep.subr.mxu0 0.0
    %328 = vmatpush2.xpose.msra.mxu0 0.0
    %329 = vmatprep.subr.mxu0 0.0
    %330 = vmatpush2.xpose.msra.mxu0 0.0
    %331 = vmatprep.subr.mxu0 0.0
    %332 = vmatpush2.xpose.msra.mxu0 0.0
    %333 = vmatprep.subr.mxu0 0.0
    %334 = vmatpush2.xpose.msra.mxu0 0.0
    %335 = vmatprep.mubr.f32.mxu0 0.0
    %336 = vmatmul.mubr.f32.gmra.mxu0 %v267
    %v337 = vpop.f32.mrf.mxu0
    %v338 = vadd.f32 0.0, %v337
    %v339 = vpop.f32.mrf.mxu0
    %340 = vdwg.mxu0
    %v341 = vmul.f32 %v338, 0.35355338
    %v342 = vadd.f32 %v341, %v65
    %v343 = vsel %vm266, %v342, -inf
    %344 = vmax.xlane.f32.xlu0 %v343
    %v345 = vpop.xlane.xlu0 %344
    %v346 = vsub.f32 %v342, %v345
    %v347 = vmul.f32 %v346, 1.442695
    %v348 = vpow.pop %v347
    %v349 = vsel %vm266, %v348, 0.0
    %350 = vadd.xlane.f32.xlu0 %v349
    %v351 = vpop.xlane.xlu0 %350
    %v352 = vrcp.pop %v351
    %v353 = vmul.f32 %v348, %v352
    %354 = vrot.lane.b32.xlu0 %v251, 64
    %v355 = vpop.permute.xlu0 %354
    %v358 = vsel %vm266, %v353, 0
    %360 = vmatprep.subr.mxu0 0.0
    %361 = vmatpush1.msra.mxu0 0.0
    %362 = vmatprep.subr.mxu0 0.0
    %363 = vmatpush1.msra.mxu0 0.0
    %364 = vmatprep.subr.mxu0 0.0
    %365 = vmatpush1.msra.mxu0 0.0
    %366 = vmatprep.subr.mxu0 0.0
    %367 = vmatpush1.msra.mxu0 0.0
    %368 = vmatprep.subr.mxu0 0.0
    %369 = vmatpush1.msra.mxu0 0.0
    %370 = vmatprep.subr.mxu0 0.0
    %371 = vmatpush1.msra.mxu0 0.0
    %372 = vmatprep.subr.mxu0 0.0
    %373 = vmatpush1.msra.mxu0 0.0
    %374 = vmatprep.subr.mxu0 0.0
    %375 = vmatpush1.msra.mxu0 0.0
    %376 = vmatprep.subr.mxu0 0.0
    %377 = vmatpush1.msra.mxu0 0.0
    %378 = vmatprep.subr.mxu0 0.0
    %379 = vmatpush1.msra.mxu0 0.0
    %380 = vmatprep.subr.mxu0 0.0
    %381 = vmatpush1.msra.mxu0 0.0
    %382 = vmatprep.subr.mxu0 0.0
    %383 = vmatpush1.msra.mxu0 0.0
    %384 = vmatprep.subr.mxu0 0.0
    %385 = vmatpush1.msra.mxu0 0.0
    %386 = vmatprep.subr.mxu0 0.0
    %387 = vmatpush1.msra.mxu0 0.0
    %388 = vmatprep.subr.mxu0 0.0
    %389 = vmatpush1.msra.mxu0 0.0
    %390 = vmatprep.subr.mxu0 0.0
    %391 = vmatpush1.msra.mxu0 %v355
    %392 = vmatprep.subr.mxu0 0.0
    %393 = vmatpush2.msra.mxu0 0.0
    %394 = vmatprep.subr.mxu0 0.0
    %395 = vmatpush2.msra.mxu0 0.0
    %396 = vmatprep.subr.mxu0 0.0
    %397 = vmatpush2.msra.mxu0 0.0
    %398 = vmatprep.subr.mxu0 0.0
    %399 = vmatpush2.msra.mxu0 0.0
    %400 = vmatprep.subr.mxu0 0.0
    %401 = vmatpush2.msra.mxu0 0.0
    %402 = vmatprep.subr.mxu0 0.0
    %403 = vmatpush2.msra.mxu0 0.0
    %404 = vmatprep.subr.mxu0 0.0
    %405 = vmatpush2.msra.mxu0 0.0
    %406 = vmatprep.subr.mxu0 0.0
    %407 = vmatpush2.msra.mxu0 0.0
    %408 = vmatprep.subr.mxu0 0.0
    %409 = vmatpush2.msra.mxu0 0.0
    %410 = vmatprep.subr.mxu0 0.0
    %411 = vmatpush2.msra.mxu0 0.0
    %412 = vmatprep.subr.mxu0 0.0
    %413 = vmatpush2.msra.mxu0 0.0
    %414 = vmatprep.subr.mxu0 0.0
    %415 = vmatpush2.msra.mxu0 0.0
    %416 = vmatprep.subr.mxu0 0.0
    %417 = vmatpush2.msra.mxu0 0.0
    %418 = vmatprep.subr.mxu0 0.0
    %419 = vmatpush2.msra.mxu0 0.0
    %420 = vmatprep.subr.mxu0 0.0
    %421 = vmatpush2.msra.mxu0 0.0
    %422 = vmatprep.subr.mxu0 0.0
    %423 = vmatpush2.msra.mxu0 0.0
    %424 = vmatprep.mubr.f32.mxu0 0.0
    %425 = vmatmul.mubr.f32.gmra.mxu0 %v358
    %v426 = vpop.f32.mrf.mxu0
    %v427 = vadd.f32 0.0, %v426
    %v428 = vpop.f32.mrf.mxu0
    %429 = vdwg.mxu0
    %430 = vrot.lane.b32.xlu0 %v251, 120
    %v431 = vpop.permute.xlu0 %430
    %432 = vrot.lane.b32.xlu0 %v251, 88
    %v433 = vpop.permute.xlu0 %432
    %v434 = vsel %vm266, %v431, 0
    %v436 = vsel %vm266, %v433, 0
    %438 = vmatprep.subr.mxu0 0.0
    %439 = vmatpush1.xpose.msra.mxu0 0.0
    %440 = vmatprep.subr.mxu0 0.0
    %441 = vmatpush1.xpose.msra.mxu0 0.0
    %442 = vmatprep.subr.mxu0 0.0
    %443 = vmatpush1.xpose.msra.mxu0 0.0
    %444 = vmatprep.subr.mxu0 0.0
    %445 = vmatpush1.xpose.msra.mxu0 0.0
    %446 = vmatprep.subr.mxu0 0.0
    %447 = vmatpush1.xpose.msra.mxu0 0.0
    %448 = vmatprep.subr.mxu0 0.0
    %449 = vmatpush1.xpose.msra.mxu0 0.0
    %450 = vmatprep.subr.mxu0 0.0
    %451 = vmatpush1.xpose.msra.mxu0 0.0
    %452 = vmatprep.subr.mxu0 0.0
    %453 = vmatpush1.xpose.msra.mxu0 0.0
    %454 = vmatprep.subr.mxu0 0.0
    %455 = vmatpush1.xpose.msra.mxu0 0.0
    %456 = vmatprep.subr.mxu0 0.0
    %457 = vmatpush1.xpose.msra.mxu0 0.0
    %458 = vmatprep.subr.mxu0 0.0
    %459 = vmatpush1.xpose.msra.mxu0 0.0
    %460 = vmatprep.subr.mxu0 0.0
    %461 = vmatpush1.xpose.msra.mxu0 0.0
    %462 = vmatprep.subr.mxu0 0.0
    %463 = vmatpush1.xpose.msra.mxu0 0.0
    %464 = vmatprep.subr.mxu0 0.0
    %465 = vmatpush1.xpose.msra.mxu0 0.0
    %466 = vmatprep.subr.mxu0 0.0
    %467 = vmatpush1.xpose.msra.mxu0 0.0
    %468 = vmatprep.subr.mxu0 0.0
    %469 = vmatpush1.xpose.msra.mxu0 %v436
    %470 = vmatprep.subr.mxu0 0.0
    %471 = vmatpush2.xpose.msra.mxu0 0.0
    %472 = vmatprep.subr.mxu0 0.0
    %473 = vmatpush2.xpose.msra.mxu0 0.0
    %474 = vmatprep.subr.mxu0 0.0
    %475 = vmatpush2.xpose.msra.mxu0 0.0
    %476 = vmatprep.subr.mxu0 0.0
    %477 = vmatpush2.xpose.msra.mxu0 0.0
    %478 = vmatprep.subr.mxu0 0.0
    %479 = vmatpush2.xpose.msra.mxu0 0.0
    %480 = vmatprep.subr.mxu0 0.0
    %481 = vmatpush2.xpose.msra.mxu0 0.0
    %482 = vmatprep.subr.mxu0 0.0
    %483 = vmatpush2.xpose.msra.mxu0 0.0
    %484 = vmatprep.subr.mxu0 0.0
    %485 = vmatpush2.xpose.msra.mxu0 0.0
    %486 = vmatprep.subr.mxu0 0.0
    %487 = vmatpush2.xpose.msra.mxu0 0.0
    %488 = vmatprep.subr.mxu0 0.0
    %489 = vmatpush2.xpose.msra.mxu0 0.0
    %490 = vmatprep.subr.mxu0 0.0
    %491 = vmatpush2.xpose.msra.mxu0 0.0
    %492 = vmatprep.subr.mxu0 0.0
    %493 = vmatpush2.xpose.msra.mxu0 0.0
    %494 = vmatprep.subr.mxu0 0.0
    %495 = vmatpush2.xpose.msra.mxu0 0.0
    %496 = vmatprep.subr.mxu0 0.0
    %497 = vmatpush2.xpose.msra.mxu0 0.0
    %498 = vmatprep.subr.mxu0 0.0
    %499 = vmatpush2.xpose.msra.mxu0 0.0
    %500 = vmatprep.subr.mxu0 0.0
    %501 = vmatpush2.xpose.msra.mxu0 0.0
    %502 = vmatprep.mubr.f32.mxu0 0.0
    %503 = vmatmul.mubr.f32.gmra.mxu0 %v434
    %v504 = vpop.f32.mrf.mxu0
    %v505 = vadd.f32 0.0, %v504
    %v506 = vpop.f32.mrf.mxu0
    %507 = vdwg.mxu0
    %v508 = vmul.f32 %v505, 0.35355338
    %v509 = vadd.f32 %v508, %v65
    %v510 = vsel %vm266, %v509, -inf
    %511 = vmax.xlane.f32.xlu0 %v510
    %v512 = vpop.xlane.xlu0 %511
    %v513 = vsub.f32 %v509, %v512
    %v514 = vmul.f32 %v513, 1.442695
    %v515 = vpow.pop %v514
    %v516 = vsel %vm266, %v515, 0.0
    %517 = vadd.xlane.f32.xlu0 %v516
    %v518 = vpop.xlane.xlu0 %517
    %v519 = vrcp.pop %v518
    %v520 = vmul.f32 %v515, %v519
    %521 = vrot.lane.b32.xlu0 %v251, 56
    %v522 = vpop.permute.xlu0 %521
    %v525 = vsel %vm266, %v520, 0
    %527 = vmatprep.subr.mxu0 0.0
    %528 = vmatpush1.msra.mxu0 0.0
    %529 = vmatprep.subr.mxu0 0.0
    %530 = vmatpush1.msra.mxu0 0.0
    %531 = vmatprep.subr.mxu0 0.0
    %532 = vmatpush1.msra.mxu0 0.0
    %533 = vmatprep.subr.mxu0 0.0
    %534 = vmatpush1.msra.mxu0 0.0
    %535 = vmatprep.subr.mxu0 0.0
    %536 = vmatpush1.msra.mxu0 0.0
    %537 = vmatprep.subr.mxu0 0.0
    %538 = vmatpush1.msra.mxu0 0.0
    %539 = vmatprep.subr.mxu0 0.0
    %540 = vmatpush1.msra.mxu0 0.0
    %541 = vmatprep.subr.mxu0 0.0
    %542 = vmatpush1.msra.mxu0 0.0
    %543 = vmatprep.subr.mxu0 0.0
    %544 = vmatpush1.msra.mxu0 0.0
    %545 = vmatprep.subr.mxu0 0.0
    %546 = vmatpush1.msra.mxu0 0.0
    %547 = vmatprep.subr.mxu0 0.0
    %548 = vmatpush1.msra.mxu0 0.0
    %549 = vmatprep.subr.mxu0 0.0
    %550 = vmatpush1.msra.mxu0 0.0
    %551 = vmatprep.subr.mxu0 0.0
    %552 = vmatpush1.msra.mxu0 0.0
    %553 = vmatprep.subr.mxu0 0.0
    %554 = vmatpush1.msra.mxu0 0.0
    %555 = vmatprep.subr.mxu0 0.0
    %556 = vmatpush1.msra.mxu0 0.0
    %557 = vmatprep.subr.mxu0 0.0
    %558 = vmatpush1.msra.mxu0 %v522
    %559 = vmatprep.subr.mxu0 0.0
    %560 = vmatpush2.msra.mxu0 0.0
    %561 = vmatprep.subr.mxu0 0.0
    %562 = vmatpush2.msra.mxu0 0.0
    %563 = vmatprep.subr.mxu0 0.0
    %564 = vmatpush2.msra.mxu0 0.0
    %565 = vmatprep.subr.mxu0 0.0
    %566 = vmatpush2.msra.mxu0 0.0
    %567 = vmatprep.subr.mxu0 0.0
    %568 = vmatpush2.msra.mxu0 0.0
    %569 = vmatprep.subr.mxu0 0.0
    %570 = vmatpush2.msra.mxu0 0.0
    %571 = vmatprep.subr.mxu0 0.0
    %572 = vmatpush2.msra.mxu0 0.0
    %573 = vmatprep.subr.mxu0 0.0
    %574 = vmatpush2.msra.mxu0 0.0
    %575 = vmatprep.subr.mxu0 0.0
    %576 = vmatpush2.msra.mxu0 0.0
    %577 = vmatprep.subr.mxu0 0.0
    %578 = vmatpush2.msra.mxu0 0.0
    %579 = vmatprep.subr.mxu0 0.0
    %580 = vmatpush2.msra.mxu0 0.0
    %581 = vmatprep.subr.mxu0 0.0
    %582 = vmatpush2.msra.mxu0 0.0
    %583 = vmatprep.subr.mxu0 0.0
    %584 = vmatpush2.msra.mxu0 0.0
    %585 = vmatprep.subr.mxu0 0.0
    %586 = vmatpush2.msra.mxu0 0.0
    %587 = vmatprep.subr.mxu0 0.0
    %588 = vmatpush2.msra.mxu0 0.0
    %589 = vmatprep.subr.mxu0 0.0
    %590 = vmatpush2.msra.mxu0 0.0
    %591 = vmatprep.mubr.f32.mxu0 0.0
    %592 = vmatmul.mubr.f32.gmra.mxu0 %v525
    %v593 = vpop.f32.mrf.mxu0
    %v594 = vadd.f32 0.0, %v593
    %v595 = vpop.f32.mrf.mxu0
    %596 = vdwg.mxu0
    %v598 = vsel %vm266, %v594, 0
    %600 = vmatprep.subr.mxu0 0.0
    %601 = vmatpush1.msra.mxu0 0.0
    %602 = vmatprep.subr.mxu0 0.0
    %603 = vmatpush1.msra.mxu0 0.0
    %604 = vmatprep.subr.mxu0 0.0
    %605 = vmatpush1.msra.mxu0 0.0
    %606 = vmatprep.subr.mxu0 0.0
    %607 = vmatpush1.msra.mxu0 0.0
    %608 = vmatprep.subr.mxu0 0.0
    %609 = vmatpush1.msra.mxu0 0.0
    %610 = vmatprep.subr.mxu0 0.0
    %611 = vmatpush1.msra.mxu0 0.0
    %612 = vmatprep.subr.mxu0 0.0
    %613 = vmatpush1.msra.mxu0 0.0
    %614 = vmatprep.subr.mxu0 0.0
    %615 = vmatpush1.msra.mxu0 0.0
    %616 = vmatprep.subr.mxu0 0.0
    %617 = vmatpush1.msra.mxu0 0.0
    %618 = vmatprep.subr.mxu0 0.0
    %619 = vmatpush1.msra.mxu0 0.0
    %620 = vmatprep.subr.mxu0 0.0
    %621 = vmatpush1.msra.mxu0 0.0
    %622 = vmatprep.subr.mxu0 0.0
    %623 = vmatpush1.msra.mxu0 0.0
    %624 = vmatprep.subr.mxu0 0.0
    %625 = vmatpush1.msra.mxu0 0.0
    %626 = vmatprep.subr.mxu0 0.0
    %627 = vmatpush1.msra.mxu0 0.0
    %628 = vmatprep.subr.mxu0 0.0
    %629 = vmatpush1.msra.mxu0 0.0
    %630 = vmatprep.subr.mxu0 0.0
    %631 = vmatpush1.msra.mxu0 %v260
    %632 = vmatprep.subr.mxu0 0.0
    %633 = vmatpush2.msra.mxu0 0.0
    %634 = vmatprep.subr.mxu0 0.0
    %635 = vmatpush2.msra.mxu0 0.0
    %636 = vmatprep.subr.mxu0 0.0
    %637 = vmatpush2.msra.mxu0 0.0
    %638 = vmatprep.subr.mxu0 0.0
    %639 = vmatpush2.msra.mxu0 0.0
    %640 = vmatprep.subr.mxu0 0.0
    %641 = vmatpush2.msra.mxu0 0.0
    %642 = vmatprep.subr.mxu0 0.0
    %643 = vmatpush2.msra.mxu0 0.0
    %644 = vmatprep.subr.mxu0 0.0
    %645 = vmatpush2.msra.mxu0 0.0
    %646 = vmatprep.subr.mxu0 0.0
    %647 = vmatpush2.msra.mxu0 0.0
    %648 = vmatprep.subr.mxu0 0.0
    %649 = vmatpush2.msra.mxu0 0.0
    %650 = vmatprep.subr.mxu0 0.0
    %651 = vmatpush2.msra.mxu0 0.0
    %652 = vmatprep.subr.mxu0 0.0
    %653 = vmatpush2.msra.mxu0 0.0
    %654 = vmatprep.subr.mxu0 0.0
    %655 = vmatpush2.msra.mxu0 0.0
    %656 = vmatprep.subr.mxu0 0.0
    %657 = vmatpush2.msra.mxu0 0.0
    %658 = vmatprep.subr.mxu0 0.0
    %659 = vmatpush2.msra.mxu0 0.0
    %660 = vmatprep.subr.mxu0 0.0
    %661 = vmatpush2.msra.mxu0 0.0
    %662 = vmatprep.subr.mxu0 0.0
    %663 = vmatpush2.msra.mxu0 0.0
    %664 = vmatprep.mubr.f32.mxu0 0.0
    %665 = vmatmul.mubr.f32.gmra.mxu0 %v598
    %v666 = vpop.f32.mrf.mxu0
    %v667 = vadd.f32 0.0, %v666
    %v668 = vpop.f32.mrf.mxu0
    %669 = vdwg.mxu0
    %v671 = vsel %vm266, %v427, 0
    %673 = vmatprep.subr.mxu0 0.0
    %674 = vmatpush1.msra.mxu0 0.0
    %675 = vmatprep.subr.mxu0 0.0
    %676 = vmatpush1.msra.mxu0 0.0
    %677 = vmatprep.subr.mxu0 0.0
    %678 = vmatpush1.msra.mxu0 0.0
    %679 = vmatprep.subr.mxu0 0.0
    %680 = vmatpush1.msra.mxu0 0.0
    %681 = vmatprep.subr.mxu0 0.0
    %682 = vmatpush1.msra.mxu0 0.0
    %683 = vmatprep.subr.mxu0 0.0
    %684 = vmatpush1.msra.mxu0 0.0
    %685 = vmatprep.subr.mxu0 0.0
    %686 = vmatpush1.msra.mxu0 0.0
    %687 = vmatprep.subr.mxu0 0.0
    %688 = vmatpush1.msra.mxu0 0.0
    %689 = vmatprep.subr.mxu0 0.0
    %690 = vmatpush1.msra.mxu0 0.0
    %691 = vmatprep.subr.mxu0 0.0
    %692 = vmatpush1.msra.mxu0 0.0
    %693 = vmatprep.subr.mxu0 0.0
    %694 = vmatpush1.msra.mxu0 0.0
    %695 = vmatprep.subr.mxu0 0.0
    %696 = vmatpush1.msra.mxu0 0.0
    %697 = vmatprep.subr.mxu0 0.0
    %698 = vmatpush1.msra.mxu0 0.0
    %699 = vmatprep.subr.mxu0 0.0
    %700 = vmatpush1.msra.mxu0 0.0
    %701 = vmatprep.subr.mxu0 0.0
    %702 = vmatpush1.msra.mxu0 0.0
    %703 = vmatprep.subr.mxu0 0.0
    %704 = vmatpush1.msra.mxu0 %v259
    %705 = vmatprep.subr.mxu0 0.0
    %706 = vmatpush2.msra.mxu0 0.0
    %707 = vmatprep.subr.mxu0 0.0
    %708 = vmatpush2.msra.mxu0 0.0
    %709 = vmatprep.subr.mxu0 0.0
    %710 = vmatpush2.msra.mxu0 0.0
    %711 = vmatprep.subr.mxu0 0.0
    %712 = vmatpush2.msra.mxu0 0.0
    %713 = vmatprep.subr.mxu0 0.0
    %714 = vmatpush2.msra.mxu0 0.0
    %715 = vmatprep.subr.mxu0 0.0
    %716 = vmatpush2.msra.mxu0 0.0
    %717 = vmatprep.subr.mxu0 0.0
    %718 = vmatpush2.msra.mxu0 0.0
    %719 = vmatprep.subr.mxu0 0.0
    %720 = vmatpush2.msra.mxu0 0.0
    %721 = vmatprep.subr.mxu0 0.0
    %722 = vmatpush2.msra.mxu0 0.0
    %723 = vmatprep.subr.mxu0 0.0
    %724 = vmatpush2.msra.mxu0 0.0
    %725 = vmatprep.subr.mxu0 0.0
    %726 = vmatpush2.msra.mxu0 0.0
    %727 = vmatprep.subr.mxu0 0.0
    %728 = vmatpush2.msra.mxu0 0.0
    %729 = vmatprep.subr.mxu0 0.0
    %730 = vmatpush2.msra.mxu0 0.0
    %731 = vmatprep.subr.mxu0 0.0
    %732 = vmatpush2.msra.mxu0 0.0
    %733 = vmatprep.subr.mxu0 0.0
    %734 = vmatpush2.msra.mxu0 0.0
    %735 = vmatprep.subr.mxu0 0.0
    %736 = vmatpush2.msra.mxu0 0.0
    %737 = vmatprep.mubr.f32.mxu0 0.0
    %738 = vmatmul.mubr.f32.gmra.mxu0 %v671
    %v739 = vpop.f32.mrf.mxu0
    %v740 = vadd.f32 %v667, %v739
    %v741 = vpop.f32.mrf.mxu0
    %742 = vdwg.mxu0
    %743 = vrot.lane.b32.xlu0 %v251, 112
    %v744 = vpop.permute.xlu0 %743
    %745 = vrot.lane.b32.xlu0 %v251, 80
    %v746 = vpop.permute.xlu0 %745
    %v747 = vsel %vm266, %v744, 0
    %v749 = vsel %vm266, %v746, 0
    %751 = vmatprep.subr.mxu0 0.0
    %752 = vmatpush1.xpose.msra.mxu0 0.0
    %753 = vmatprep.subr.mxu0 0.0
    %754 = vmatpush1.xpose.msra.mxu0 0.0
    %755 = vmatprep.subr.mxu0 0.0
    %756 = vmatpush1.xpose.msra.mxu0 0.0
    %757 = vmatprep.subr.mxu0 0.0
    %758 = vmatpush1.xpose.msra.mxu0 0.0
    %759 = vmatprep.subr.mxu0 0.0
    %760 = vmatpush1.xpose.msra.mxu0 0.0
    %761 = vmatprep.subr.mxu0 0.0
    %762 = vmatpush1.xpose.msra.mxu0 0.0
    %763 = vmatprep.subr.mxu0 0.0
    %764 = vmatpush1.xpose.msra.mxu0 0.0
    %765 = vmatprep.subr.mxu0 0.0
    %766 = vmatpush1.xpose.msra.mxu0 0.0
    %767 = vmatprep.subr.mxu0 0.0
    %768 = vmatpush1.xpose.msra.mxu0 0.0
    %769 = vmatprep.subr.mxu0 0.0
    %770 = vmatpush1.xpose.msra.mxu0 0.0
    %771 = vmatprep.subr.mxu0 0.0
    %772 = vmatpush1.xpose.msra.mxu0 0.0
    %773 = vmatprep.subr.mxu0 0.0
    %774 = vmatpush1.xpose.msra.mxu0 0.0
    %775 = vmatprep.subr.mxu0 0.0
    %776 = vmatpush1.xpose.msra.mxu0 0.0
    %777 = vmatprep.subr.mxu0 0.0
    %778 = vmatpush1.xpose.msra.mxu0 0.0
    %779 = vmatprep.subr.mxu0 0.0
    %780 = vmatpush1.xpose.msra.mxu0 0.0
    %781 = vmatprep.subr.mxu0 0.0
    %782 = vmatpush1.xpose.msra.mxu0 %v749
    %783 = vmatprep.subr.mxu0 0.0
    %784 = vmatpush2.xpose.msra.mxu0 0.0
    %785 = vmatprep.subr.mxu0 0.0
    %786 = vmatpush2.xpose.msra.mxu0 0.0
    %787 = vmatprep.subr.mxu0 0.0
    %788 = vmatpush2.xpose.msra.mxu0 0.0
    %789 = vmatprep.subr.mxu0 0.0
    %790 = vmatpush2.xpose.msra.mxu0 0.0
    %791 = vmatprep.subr.mxu0 0.0
    %792 = vmatpush2.xpose.msra.mxu0 0.0
    %793 = vmatprep.subr.mxu0 0.0
    %794 = vmatpush2.xpose.msra.mxu0 0.0
    %795 = vmatprep.subr.mxu0 0.0
    %796 = vmatpush2.xpose.msra.mxu0 0.0
    %797 = vmatprep.subr.mxu0 0.0
    %798 = vmatpush2.xpose.msra.mxu0 0.0
    %799 = vmatprep.subr.mxu0 0.0
    %800 = vmatpush2.xpose.msra.mxu0 0.0
    %801 = vmatprep.subr.mxu0 0.0
    %802 = vmatpush2.xpose.msra.mxu0 0.0
    %803 = vmatprep.subr.mxu0 0.0
    %804 = vmatpush2.xpose.msra.mxu0 0.0
    %805 = vmatprep.subr.mxu0 0.0
    %806 = vmatpush2.xpose.msra.mxu0 0.0
    %807 = vmatprep.subr.mxu0 0.0
    %808 = vmatpush2.xpose.msra.mxu0 0.0
    %809 = vmatprep.subr.mxu0 0.0
    %810 = vmatpush2.xpose.msra.mxu0 0.0
    %811 = vmatprep.subr.mxu0 0.0
    %812 = vmatpush2.xpose.msra.mxu0 0.0
    %813 = vmatprep.subr.mxu0 0.0
    %814 = vmatpush2.xpose.msra.mxu0 0.0
    %815 = vmatprep.mubr.f32.mxu0 0.0
    %816 = vmatmul.mubr.f32.gmra.mxu0 %v747
    %v817 = vpop.f32.mrf.mxu0
    %v818 = vadd.f32 0.0, %v817
    %v819 = vpop.f32.mrf.mxu0
    %820 = vdwg.mxu0
    %v821 = vmul.f32 %v818, 0.35355338
    %v822 = vadd.f32 %v821, %v65
    %v823 = vsel %vm266, %v822, -inf
    %824 = vmax.xlane.f32.xlu0 %v823
    %v825 = vpop.xlane.xlu0 %824
    %v826 = vsub.f32 %v822, %v825
    %v827 = vmul.f32 %v826, 1.442695
    %v828 = vpow.pop %v827
    %v829 = vsel %vm266, %v828, 0.0
    %830 = vadd.xlane.f32.xlu0 %v829
    %v831 = vpop.xlane.xlu0 %830
    %v832 = vrcp.pop %v831
    %v833 = vmul.f32 %v828, %v832
    %834 = vrot.lane.b32.xlu0 %v251, 48
    %v835 = vpop.permute.xlu0 %834
    %v838 = vsel %vm266, %v833, 0
    %840 = vmatprep.subr.mxu0 0.0
    %841 = vmatpush1.msra.mxu0 0.0
    %842 = vmatprep.subr.mxu0 0.0
    %843 = vmatpush1.msra.mxu0 0.0
    %844 = vmatprep.subr.mxu0 0.0
    %845 = vmatpush1.msra.mxu0 0.0
    %846 = vmatprep.subr.mxu0 0.0
    %847 = vmatpush1.msra.mxu0 0.0
    %848 = vmatprep.subr.mxu0 0.0
    %849 = vmatpush1.msra.mxu0 0.0
    %850 = vmatprep.subr.mxu0 0.0
    %851 = vmatpush1.msra.mxu0 0.0
    %852 = vmatprep.subr.mxu0 0.0
    %853 = vmatpush1.msra.mxu0 0.0
    %854 = vmatprep.subr.mxu0 0.0
    %855 = vmatpush1.msra.mxu0 0.0
    %856 = vmatprep.subr.mxu0 0.0
    %857 = vmatpush1.msra.mxu0 0.0
    %858 = vmatprep.subr.mxu0 0.0
    %859 = vmatpush1.msra.mxu0 0.0
    %860 = vmatprep.subr.mxu0 0.0
    %861 = vmatpush1.msra.mxu0 0.0
    %862 = vmatprep.subr.mxu0 0.0
    %863 = vmatpush1.msra.mxu0 0.0
    %864 = vmatprep.subr.mxu0 0.0
    %865 = vmatpush1.msra.mxu0 0.0
    %866 = vmatprep.subr.mxu0 0.0
    %867 = vmatpush1.msra.mxu0 0.0
    %868 = vmatprep.subr.mxu0 0.0
    %869 = vmatpush1.msra.mxu0 0.0
    %870 = vmatprep.subr.mxu0 0.0
    %871 = vmatpush1.msra.mxu0 %v835
    %872 = vmatprep.subr.mxu0 0.0
    %873 = vmatpush2.msra.mxu0 0.0
    %874 = vmatprep.subr.mxu0 0.0
    %875 = vmatpush2.msra.mxu0 0.0
    %876 = vmatprep.subr.mxu0 0.0
    %877 = vmatpush2.msra.mxu0 0.0
    %878 = vmatprep.subr.mxu0 0.0
    %879 = vmatpush2.msra.mxu0 0.0
    %880 = vmatprep.subr.mxu0 0.0
    %881 = vmatpush2.msra.mxu0 0.0
    %882 = vmatprep.subr.mxu0 0.0
    %883 = vmatpush2.msra.mxu0 0.0
    %884 = vmatprep.subr.mxu0 0.0
    %885 = vmatpush2.msra.mxu0 0.0
    %886 = vmatprep.subr.mxu0 0.0
    %887 = vmatpush2.msra.mxu0 0.0
    %888 = vmatprep.subr.mxu0 0.0
    %889 = vmatpush2.msra.mxu0 0.0
    %890 = vmatprep.subr.mxu0 0.0
    %891 = vmatpush2.msra.mxu0 0.0
    %892 = vmatprep.subr.mxu0 0.0
    %893 = vmatpush2.msra.mxu0 0.0
    %894 = vmatprep.subr.mxu0 0.0
    %895 = vmatpush2.msra.mxu0 0.0
    %896 = vmatprep.subr.mxu0 0.0
    %897 = vmatpush2.msra.mxu0 0.0
    %898 = vmatprep.subr.mxu0 0.0
    %899 = vmatpush2.msra.mxu0 0.0
    %900 = vmatprep.subr.mxu0 0.0
    %901 = vmatpush2.msra.mxu0 0.0
    %902 = vmatprep.subr.mxu0 0.0
    %903 = vmatpush2.msra.mxu0 0.0
    %904 = vmatprep.mubr.f32.mxu0 0.0
    %905 = vmatmul.mubr.f32.gmra.mxu0 %v838
    %v906 = vpop.f32.mrf.mxu0
    %v907 = vadd.f32 0.0, %v906
    %v908 = vpop.f32.mrf.mxu0
    %909 = vdwg.mxu0
    %v911 = vsel %vm266, %v907, 0
    %913 = vmatprep.subr.mxu0 0.0
    %914 = vmatpush1.msra.mxu0 0.0
    %915 = vmatprep.subr.mxu0 0.0
    %916 = vmatpush1.msra.mxu0 0.0
    %917 = vmatprep.subr.mxu0 0.0
    %918 = vmatpush1.msra.mxu0 0.0
    %919 = vmatprep.subr.mxu0 0.0
    %920 = vmatpush1.msra.mxu0 0.0
    %921 = vmatprep.subr.mxu0 0.0
    %922 = vmatpush1.msra.mxu0 0.0
    %923 = vmatprep.subr.mxu0 0.0
    %924 = vmatpush1.msra.mxu0 0.0
    %925 = vmatprep.subr.mxu0 0.0
    %926 = vmatpush1.msra.mxu0 0.0
    %927 = vmatprep.subr.mxu0 0.0
    %928 = vmatpush1.msra.mxu0 0.0
    %929 = vmatprep.subr.mxu0 0.0
    %930 = vmatpush1.msra.mxu0 0.0
    %931 = vmatprep.subr.mxu0 0.0
    %932 = vmatpush1.msra.mxu0 0.0
    %933 = vmatprep.subr.mxu0 0.0
    %934 = vmatpush1.msra.mxu0 0.0
    %935 = vmatprep.subr.mxu0 0.0
    %936 = vmatpush1.msra.mxu0 0.0
    %937 = vmatprep.subr.mxu0 0.0
    %938 = vmatpush1.msra.mxu0 0.0
    %939 = vmatprep.subr.mxu0 0.0
    %940 = vmatpush1.msra.mxu0 0.0
    %941 = vmatprep.subr.mxu0 0.0
    %942 = vmatpush1.msra.mxu0 0.0
    %943 = vmatprep.subr.mxu0 0.0
    %944 = vmatpush1.msra.mxu0 %v261
    %945 = vmatprep.subr.mxu0 0.0
    %946 = vmatpush2.msra.mxu0 0.0
    %947 = vmatprep.subr.mxu0 0.0
    %948 = vmatpush2.msra.mxu0 0.0
    %949 = vmatprep.subr.mxu0 0.0
    %950 = vmatpush2.msra.mxu0 0.0
    %951 = vmatprep.subr.mxu0 0.0
    %952 = vmatpush2.msra.mxu0 0.0
    %953 = vmatprep.subr.mxu0 0.0
    %954 = vmatpush2.msra.mxu0 0.0
    %955 = vmatprep.subr.mxu0 0.0
    %956 = vmatpush2.msra.mxu0 0.0
    %957 = vmatprep.subr.mxu0 0.0
    %958 = vmatpush2.msra.mxu0 0.0
    %959 = vmatprep.subr.mxu0 0.0
    %960 = vmatpush2.msra.mxu0 0.0
    %961 = vmatprep.subr.mxu0 0.0
    %962 = vmatpush2.msra.mxu0 0.0
    %963 = vmatprep.subr.mxu0 0.0
    %964 = vmatpush2.msra.mxu0 0.0
    %965 = vmatprep.subr.mxu0 0.0
    %966 = vmatpush2.msra.mxu0 0.0
    %967 = vmatprep.subr.mxu0 0.0
    %968 = vmatpush2.msra.mxu0 0.0
    %969 = vmatprep.subr.mxu0 0.0
    %970 = vmatpush2.msra.mxu0 0.0
    %971 = vmatprep.subr.mxu0 0.0
    %972 = vmatpush2.msra.mxu0 0.0
    %973 = vmatprep.subr.mxu0 0.0
    %974 = vmatpush2.msra.mxu0 0.0
    %975 = vmatprep.subr.mxu0 0.0
    %976 = vmatpush2.msra.mxu0 0.0
    %977 = vmatprep.mubr.f32.mxu0 0.0
    %978 = vmatmul.mubr.f32.gmra.mxu0 %v911
    %v979 = vpop.f32.mrf.mxu0
    %v980 = vadd.f32 0.0, %v979
    %v981 = vpop.f32.mrf.mxu0
    %982 = vdwg.mxu0
    %v983 = vadd.f32 %v740, %v980
    %984 = vrot.lane.b32.xlu0 %v251, 104
    %v985 = vpop.permute.xlu0 %984
    %986 = vrot.lane.b32.xlu0 %v251, 72
    %v987 = vpop.permute.xlu0 %986
    %v988 = vsel %vm266, %v985, 0
    %v990 = vsel %vm266, %v987, 0
    %992 = vmatprep.subr.mxu0 0.0
    %993 = vmatpush1.xpose.msra.mxu0 0.0
    %994 = vmatprep.subr.mxu0 0.0
    %995 = vmatpush1.xpose.msra.mxu0 0.0
    %996 = vmatprep.subr.mxu0 0.0
    %997 = vmatpush1.xpose.msra.mxu0 0.0
    %998 = vmatprep.subr.mxu0 0.0
    %999 = vmatpush1.xpose.msra.mxu0 0.0
    %1000 = vmatprep.subr.mxu0 0.0
    %1001 = vmatpush1.xpose.msra.mxu0 0.0
    %1002 = vmatprep.subr.mxu0 0.0
    %1003 = vmatpush1.xpose.msra.mxu0 0.0
    %1004 = vmatprep.subr.mxu0 0.0
    %1005 = vmatpush1.xpose.msra.mxu0 0.0
    %1006 = vmatprep.subr.mxu0 0.0
    %1007 = vmatpush1.xpose.msra.mxu0 0.0
    %1008 = vmatprep.subr.mxu0 0.0
    %1009 = vmatpush1.xpose.msra.mxu0 0.0
    %1010 = vmatprep.subr.mxu0 0.0
    %1011 = vmatpush1.xpose.msra.mxu0 0.0
    %1012 = vmatprep.subr.mxu0 0.0
    %1013 = vmatpush1.xpose.msra.mxu0 0.0
    %1014 = vmatprep.subr.mxu0 0.0
    %1015 = vmatpush1.xpose.msra.mxu0 0.0
    %1016 = vmatprep.subr.mxu0 0.0
    %1017 = vmatpush1.xpose.msra.mxu0 0.0
    %1018 = vmatprep.subr.mxu0 0.0
    %1019 = vmatpush1.xpose.msra.mxu0 0.0
    %1020 = vmatprep.subr.mxu0 0.0
    %1021 = vmatpush1.xpose.msra.mxu0 0.0
    %1022 = vmatprep.subr.mxu0 0.0
    %1023 = vmatpush1.xpose.msra.mxu0 %v990
    %1024 = vmatprep.subr.mxu0 0.0
    %1025 = vmatpush2.xpose.msra.mxu0 0.0
    %1026 = vmatprep.subr.mxu0 0.0
    %1027 = vmatpush2.xpose.msra.mxu0 0.0
    %1028 = vmatprep.subr.mxu0 0.0
    %1029 = vmatpush2.xpose.msra.mxu0 0.0
    %1030 = vmatprep.subr.mxu0 0.0
    %1031 = vmatpush2.xpose.msra.mxu0 0.0
    %1032 = vmatprep.subr.mxu0 0.0
    %1033 = vmatpush2.xpose.msra.mxu0 0.0
    %1034 = vmatprep.subr.mxu0 0.0
    %1035 = vmatpush2.xpose.msra.mxu0 0.0
    %1036 = vmatprep.subr.mxu0 0.0
    %1037 = vmatpush2.xpose.msra.mxu0 0.0
    %1038 = vmatprep.subr.mxu0 0.0
    %1039 = vmatpush2.xpose.msra.mxu0 0.0
    %1040 = vmatprep.subr.mxu0 0.0
    %1041 = vmatpush2.xpose.msra.mxu0 0.0
    %1042 = vmatprep.subr.mxu0 0.0
    %1043 = vmatpush2.xpose.msra.mxu0 0.0
    %1044 = vmatprep.subr.mxu0 0.0
    %1045 = vmatpush2.xpose.msra.mxu0 0.0
    %1046 = vmatprep.subr.mxu0 0.0
    %1047 = vmatpush2.xpose.msra.mxu0 0.0
    %1048 = vmatprep.subr.mxu0 0.0
    %1049 = vmatpush2.xpose.msra.mxu0 0.0
    %1050 = vmatprep.subr.mxu0 0.0
    %1051 = vmatpush2.xpose.msra.mxu0 0.0
    %1052 = vmatprep.subr.mxu0 0.0
    %1053 = vmatpush2.xpose.msra.mxu0 0.0
    %1054 = vmatprep.subr.mxu0 0.0
    %1055 = vmatpush2.xpose.msra.mxu0 0.0
    %1056 = vmatprep.mubr.f32.mxu0 0.0
    %1057 = vmatmul.mubr.f32.gmra.mxu0 %v988
    %v1058 = vpop.f32.mrf.mxu0
    %v1059 = vadd.f32 0.0, %v1058
    %v1060 = vpop.f32.mrf.mxu0
    %1061 = vdwg.mxu0
    %v1062 = vmul.f32 %v1059, 0.35355338
    %v1063 = vadd.f32 %v1062, %v65
    %v1064 = vsel %vm266, %v1063, -inf
    %1065 = vmax.xlane.f32.xlu0 %v1064
    %v1066 = vpop.xlane.xlu0 %1065
    %v1067 = vsub.f32 %v1063, %v1066
    %v1068 = vmul.f32 %v1067, 1.442695
    %v1069 = vpow.pop %v1068
    %v1070 = vsel %vm266, %v1069, 0.0
    %1071 = vadd.xlane.f32.xlu0 %v1070
    %v1072 = vpop.xlane.xlu0 %1071
    %v1073 = vrcp.pop %v1072
    %v1074 = vmul.f32 %v1069, %v1073
    %1075 = vrot.lane.b32.xlu0 %v251, 40
    %v1076 = vpop.permute.xlu0 %1075
    %v1079 = vsel %vm266, %v1074, 0
    %1081 = vmatprep.subr.mxu0 0.0
    %1082 = vmatpush1.msra.mxu0 0.0
    %1083 = vmatprep.subr.mxu0 0.0
    %1084 = vmatpush1.msra.mxu0 0.0
    %1085 = vmatprep.subr.mxu0 0.0
    %1086 = vmatpush1.msra.mxu0 0.0
    %1087 = vmatprep.subr.mxu0 0.0
    %1088 = vmatpush1.msra.mxu0 0.0
    %1089 = vmatprep.subr.mxu0 0.0
    %1090 = vmatpush1.msra.mxu0 0.0
    %1091 = vmatprep.subr.mxu0 0.0
    %1092 = vmatpush1.msra.mxu0 0.0
    %1093 = vmatprep.subr.mxu0 0.0
    %1094 = vmatpush1.msra.mxu0 0.0
    %1095 = vmatprep.subr.mxu0 0.0
    %1096 = vmatpush1.msra.mxu0 0.0
    %1097 = vmatprep.subr.mxu0 0.0
    %1098 = vmatpush1.msra.mxu0 0.0
    %1099 = vmatprep.subr.mxu0 0.0
    %1100 = vmatpush1.msra.mxu0 0.0
    %1101 = vmatprep.subr.mxu0 0.0
    %1102 = vmatpush1.msra.mxu0 0.0
    %1103 = vmatprep.subr.mxu0 0.0
    %1104 = vmatpush1.msra.mxu0 0.0
    %1105 = vmatprep.subr.mxu0 0.0
    %1106 = vmatpush1.msra.mxu0 0.0
    %1107 = vmatprep.subr.mxu0 0.0
    %1108 = vmatpush1.msra.mxu0 0.0
    %1109 = vmatprep.subr.mxu0 0.0
    %1110 = vmatpush1.msra.mxu0 0.0
    %1111 = vmatprep.subr.mxu0 0.0
    %1112 = vmatpush1.msra.mxu0 %v1076
    %1113 = vmatprep.subr.mxu0 0.0
    %1114 = vmatpush2.msra.mxu0 0.0
    %1115 = vmatprep.subr.mxu0 0.0
    %1116 = vmatpush2.msra.mxu0 0.0
    %1117 = vmatprep.subr.mxu0 0.0
    %1118 = vmatpush2.msra.mxu0 0.0
    %1119 = vmatprep.subr.mxu0 0.0
    %1120 = vmatpush2.msra.mxu0 0.0
    %1121 = vmatprep.subr.mxu0 0.0
    %1122 = vmatpush2.msra.mxu0 0.0
    %1123 = vmatprep.subr.mxu0 0.0
    %1124 = vmatpush2.msra.mxu0 0.0
    %1125 = vmatprep.subr.mxu0 0.0
    %1126 = vmatpush2.msra.mxu0 0.0
    %1127 = vmatprep.subr.mxu0 0.0
    %1128 = vmatpush2.msra.mxu0 0.0
    %1129 = vmatprep.subr.mxu0 0.0
    %1130 = vmatpush2.msra.mxu0 0.0
    %1131 = vmatprep.subr.mxu0 0.0
    %1132 = vmatpush2.msra.mxu0 0.0
    %1133 = vmatprep.subr.mxu0 0.0
    %1134 = vmatpush2.msra.mxu0 0.0
    %1135 = vmatprep.subr.mxu0 0.0
    %1136 = vmatpush2.msra.mxu0 0.0
    %1137 = vmatprep.subr.mxu0 0.0
    %1138 = vmatpush2.msra.mxu0 0.0
    %1139 = vmatprep.subr.mxu0 0.0
    %1140 = vmatpush2.msra.mxu0 0.0
    %1141 = vmatprep.subr.mxu0 0.0
    %1142 = vmatpush2.msra.mxu0 0.0
    %1143 = vmatprep.subr.mxu0 0.0
    %1144 = vmatpush2.msra.mxu0 0.0
    %1145 = vmatprep.mubr.f32.mxu0 0.0
    %1146 = vmatmul.mubr.f32.gmra.mxu0 %v1079
    %v1147 = vpop.f32.mrf.mxu0
    %v1148 = vadd.f32 0.0, %v1147
    %v1149 = vpop.f32.mrf.mxu0
    %1150 = vdwg.mxu0
    %v1152 = vsel %vm266, %v1148, 0
    %1154 = vmatprep.subr.mxu0 0.0
    %1155 = vmatpush1.msra.mxu0 0.0
    %1156 = vmatprep.subr.mxu0 0.0
    %1157 = vmatpush1.msra.mxu0 0.0
    %1158 = vmatprep.subr.mxu0 0.0
    %1159 = vmatpush1.msra.mxu0 0.0
    %1160 = vmatprep.subr.mxu0 0.0
    %1161 = vmatpush1.msra.mxu0 0.0
    %1162 = vmatprep.subr.mxu0 0.0
    %1163 = vmatpush1.msra.mxu0 0.0
    %1164 = vmatprep.subr.mxu0 0.0
    %1165 = vmatpush1.msra.mxu0 0.0
    %1166 = vmatprep.subr.mxu0 0.0
    %1167 = vmatpush1.msra.mxu0 0.0
    %1168 = vmatprep.subr.mxu0 0.0
    %1169 = vmatpush1.msra.mxu0 0.0
    %1170 = vmatprep.subr.mxu0 0.0
    %1171 = vmatpush1.msra.mxu0 0.0
    %1172 = vmatprep.subr.mxu0 0.0
    %1173 = vmatpush1.msra.mxu0 0.0
    %1174 = vmatprep.subr.mxu0 0.0
    %1175 = vmatpush1.msra.mxu0 0.0
    %1176 = vmatprep.subr.mxu0 0.0
    %1177 = vmatpush1.msra.mxu0 0.0
    %1178 = vmatprep.subr.mxu0 0.0
    %1179 = vmatpush1.msra.mxu0 0.0
    %1180 = vmatprep.subr.mxu0 0.0
    %1181 = vmatpush1.msra.mxu0 0.0
    %1182 = vmatprep.subr.mxu0 0.0
    %1183 = vmatpush1.msra.mxu0 0.0
    %1184 = vmatprep.subr.mxu0 0.0
    %1185 = vmatpush1.msra.mxu0 %v262
    %1186 = vmatprep.subr.mxu0 0.0
    %1187 = vmatpush2.msra.mxu0 0.0
    %1188 = vmatprep.subr.mxu0 0.0
    %1189 = vmatpush2.msra.mxu0 0.0
    %1190 = vmatprep.subr.mxu0 0.0
    %1191 = vmatpush2.msra.mxu0 0.0
    %1192 = vmatprep.subr.mxu0 0.0
    %1193 = vmatpush2.msra.mxu0 0.0
    %1194 = vmatprep.subr.mxu0 0.0
    %1195 = vmatpush2.msra.mxu0 0.0
    %1196 = vmatprep.subr.mxu0 0.0
    %1197 = vmatpush2.msra.mxu0 0.0
    %1198 = vmatprep.subr.mxu0 0.0
    %1199 = vmatpush2.msra.mxu0 0.0
    %1200 = vmatprep.subr.mxu0 0.0
    %1201 = vmatpush2.msra.mxu0 0.0
    %1202 = vmatprep.subr.mxu0 0.0
    %1203 = vmatpush2.msra.mxu0 0.0
    %1204 = vmatprep.subr.mxu0 0.0
    %1205 = vmatpush2.msra.mxu0 0.0
    %1206 = vmatprep.subr.mxu0 0.0
    %1207 = vmatpush2.msra.mxu0 0.0
    %1208 = vmatprep.subr.mxu0 0.0
    %1209 = vmatpush2.msra.mxu0 0.0
    %1210 = vmatprep.subr.mxu0 0.0
    %1211 = vmatpush2.msra.mxu0 0.0
    %1212 = vmatprep.subr.mxu0 0.0
    %1213 = vmatpush2.msra.mxu0 0.0
    %1214 = vmatprep.subr.mxu0 0.0
    %1215 = vmatpush2.msra.mxu0 0.0
    %1216 = vmatprep.subr.mxu0 0.0
    %1217 = vmatpush2.msra.mxu0 0.0
    %1218 = vmatprep.mubr.f32.mxu0 0.0
    %1219 = vmatmul.mubr.f32.gmra.mxu0 %v1152
    %v1220 = vpop.f32.mrf.mxu0
    %v1221 = vadd.f32 0.0, %v1220
    %v1222 = vpop.f32.mrf.mxu0
    %1223 = vdwg.mxu0
    %v1224 = vadd.f32 %v983, %v1221
    %1226 = vrot.lane.b32.xlu0 %v256, 96
    %v1227 = vpop.permute.xlu0 %1226
    %v1228 = vsel %vm266, %v256, 0
    %v1230 = vsel %vm266, %v1227, 0
    %1232 = vmatprep.subr.mxu0 0.0
    %1233 = vmatpush1.xpose.msra.mxu0 0.0
    %1234 = vmatprep.subr.mxu0 0.0
    %1235 = vmatpush1.xpose.msra.mxu0 0.0
    %1236 = vmatprep.subr.mxu0 0.0
    %1237 = vmatpush1.xpose.msra.mxu0 0.0
    %1238 = vmatprep.subr.mxu0 0.0
    %1239 = vmatpush1.xpose.msra.mxu0 0.0
    %1240 = vmatprep.subr.mxu0 0.0
    %1241 = vmatpush1.xpose.msra.mxu0 0.0
    %1242 = vmatprep.subr.mxu0 0.0
    %1243 = vmatpush1.xpose.msra.mxu0 0.0
    %1244 = vmatprep.subr.mxu0 0.0
    %1245 = vmatpush1.xpose.msra.mxu0 0.0
    %1246 = vmatprep.subr.mxu0 0.0
    %1247 = vmatpush1.xpose.msra.mxu0 0.0
    %1248 = vmatprep.subr.mxu0 0.0
    %1249 = vmatpush1.xpose.msra.mxu0 0.0
    %1250 = vmatprep.subr.mxu0 0.0
    %1251 = vmatpush1.xpose.msra.mxu0 0.0
    %1252 = vmatprep.subr.mxu0 0.0
    %1253 = vmatpush1.xpose.msra.mxu0 0.0
    %1254 = vmatprep.subr.mxu0 0.0
    %1255 = vmatpush1.xpose.msra.mxu0 0.0
    %1256 = vmatprep.subr.mxu0 0.0
    %1257 = vmatpush1.xpose.msra.mxu0 0.0
    %1258 = vmatprep.subr.mxu0 0.0
    %1259 = vmatpush1.xpose.msra.mxu0 0.0
    %1260 = vmatprep.subr.mxu0 0.0
    %1261 = vmatpush1.xpose.msra.mxu0 0.0
    %1262 = vmatprep.subr.mxu0 0.0
    %1263 = vmatpush1.xpose.msra.mxu0 %v1230
    %1264 = vmatprep.subr.mxu0 0.0
    %1265 = vmatpush2.xpose.msra.mxu0 0.0
    %1266 = vmatprep.subr.mxu0 0.0
    %1267 = vmatpush2.xpose.msra.mxu0 0.0
    %1268 = vmatprep.subr.mxu0 0.0
    %1269 = vmatpush2.xpose.msra.mxu0 0.0
    %1270 = vmatprep.subr.mxu0 0.0
    %1271 = vmatpush2.xpose.msra.mxu0 0.0
    %1272 = vmatprep.subr.mxu0 0.0
    %1273 = vmatpush2.xpose.msra.mxu0 0.0
    %1274 = vmatprep.subr.mxu0 0.0
    %1275 = vmatpush2.xpose.msra.mxu0 0.0
    %1276 = vmatprep.subr.mxu0 0.0
    %1277 = vmatpush2.xpose.msra.mxu0 0.0
    %1278 = vmatprep.subr.mxu0 0.0
    %1279 = vmatpush2.xpose.msra.mxu0 0.0
    %1280 = vmatprep.subr.mxu0 0.0
    %1281 = vmatpush2.xpose.msra.mxu0 0.0
    %1282 = vmatprep.subr.mxu0 0.0
    %1283 = vmatpush2.xpose.msra.mxu0 0.0
    %1284 = vmatprep.subr.mxu0 0.0
    %1285 = vmatpush2.xpose.msra.mxu0 0.0
    %1286 = vmatprep.subr.mxu0 0.0
    %1287 = vmatpush2.xpose.msra.mxu0 0.0
    %1288 = vmatprep.subr.mxu0 0.0
    %1289 = vmatpush2.xpose.msra.mxu0 0.0
    %1290 = vmatprep.subr.mxu0 0.0
    %1291 = vmatpush2.xpose.msra.mxu0 0.0
    %1292 = vmatprep.subr.mxu0 0.0
    %1293 = vmatpush2.xpose.msra.mxu0 0.0
    %1294 = vmatprep.subr.mxu0 0.0
    %1295 = vmatpush2.xpose.msra.mxu0 0.0
    %1296 = vmatprep.mubr.f32.mxu0 0.0
    %1297 = vmatmul.mubr.f32.gmra.mxu0 %v1228
    %v1298 = vpop.f32.mrf.mxu0
    %v1299 = vadd.f32 0.0, %v1298
    %v1300 = vpop.f32.mrf.mxu0
    %1301 = vdwg.mxu0
    %v1302 = vmul.f32 %v1299, 0.35355338
    %v1303 = vadd.f32 %v1302, %v65
    %v1304 = vsel %vm266, %v1303, -inf
    %1305 = vmax.xlane.f32.xlu0 %v1304
    %v1306 = vpop.xlane.xlu0 %1305
    %v1307 = vsub.f32 %v1303, %v1306
    %v1308 = vmul.f32 %v1307, 1.442695
    %v1309 = vpow.pop %v1308
    %v1310 = vsel %vm266, %v1309, 0.0
    %1311 = vadd.xlane.f32.xlu0 %v1310
    %v1312 = vpop.xlane.xlu0 %1311
    %v1313 = vrcp.pop %v1312
    %v1314 = vmul.f32 %v1309, %v1313
    %1315 = vrot.lane.b32.xlu0 %v256, 64
    %v1316 = vpop.permute.xlu0 %1315
    %v1319 = vsel %vm266, %v1314, 0
    %1321 = vmatprep.subr.mxu0 0.0
    %1322 = vmatpush1.msra.mxu0 0.0
    %1323 = vmatprep.subr.mxu0 0.0
    %1324 = vmatpush1.msra.mxu0 0.0
    %1325 = vmatprep.subr.mxu0 0.0
    %1326 = vmatpush1.msra.mxu0 0.0
    %1327 = vmatprep.subr.mxu0 0.0
    %1328 = vmatpush1.msra.mxu0 0.0
    %1329 = vmatprep.subr.mxu0 0.0
    %1330 = vmatpush1.msra.mxu0 0.0
    %1331 = vmatprep.subr.mxu0 0.0
    %1332 = vmatpush1.msra.mxu0 0.0
    %1333 = vmatprep.subr.mxu0 0.0
    %1334 = vmatpush1.msra.mxu0 0.0
    %1335 = vmatprep.subr.mxu0 0.0
    %1336 = vmatpush1.msra.mxu0 0.0
    %1337 = vmatprep.subr.mxu0 0.0
    %1338 = vmatpush1.msra.mxu0 0.0
    %1339 = vmatprep.subr.mxu0 0.0
    %1340 = vmatpush1.msra.mxu0 0.0
    %1341 = vmatprep.subr.mxu0 0.0
    %1342 = vmatpush1.msra.mxu0 0.0
    %1343 = vmatprep.subr.mxu0 0.0
    %1344 = vmatpush1.msra.mxu0 0.0
    %1345 = vmatprep.subr.mxu0 0.0
    %1346 = vmatpush1.msra.mxu0 0.0
    %1347 = vmatprep.subr.mxu0 0.0
    %1348 = vmatpush1.msra.mxu0 0.0
    %1349 = vmatprep.subr.mxu0 0.0
    %1350 = vmatpush1.msra.mxu0 0.0
    %1351 = vmatprep.subr.mxu0 0.0
    %1352 = vmatpush1.msra.mxu0 %v1316
    %1353 = vmatprep.subr.mxu0 0.0
    %1354 = vmatpush2.msra.mxu0 0.0
    %1355 = vmatprep.subr.mxu0 0.0
    %1356 = vmatpush2.msra.mxu0 0.0
    %1357 = vmatprep.subr.mxu0 0.0
    %1358 = vmatpush2.msra.mxu0 0.0
    %1359 = vmatprep.subr.mxu0 0.0
    %1360 = vmatpush2.msra.mxu0 0.0
    %1361 = vmatprep.subr.mxu0 0.0
    %1362 = vmatpush2.msra.mxu0 0.0
    %1363 = vmatprep.subr.mxu0 0.0
    %1364 = vmatpush2.msra.mxu0 0.0
    %1365 = vmatprep.subr.mxu0 0.0
    %1366 = vmatpush2.msra.mxu0 0.0
    %1367 = vmatprep.subr.mxu0 0.0
    %1368 = vmatpush2.msra.mxu0 0.0
    %1369 = vmatprep.subr.mxu0 0.0
    %1370 = vmatpush2.msra.mxu0 0.0
    %1371 = vmatprep.subr.mxu0 0.0
    %1372 = vmatpush2.msra.mxu0 0.0
    %1373 = vmatprep.subr.mxu0 0.0
    %1374 = vmatpush2.msra.mxu0 0.0
    %1375 = vmatprep.subr.mxu0 0.0
    %1376 = vmatpush2.msra.mxu0 0.0
    %1377 = vmatprep.subr.mxu0 0.0
    %1378 = vmatpush2.msra.mxu0 0.0
    %1379 = vmatprep.subr.mxu0 0.0
    %1380 = vmatpush2.msra.mxu0 0.0
    %1381 = vmatprep.subr.mxu0 0.0
    %1382 = vmatpush2.msra.mxu0 0.0
    %1383 = vmatprep.subr.mxu0 0.0
    %1384 = vmatpush2.msra.mxu0 0.0
    %1385 = vmatprep.mubr.f32.mxu0 0.0
    %1386 = vmatmul.mubr.f32.gmra.mxu0 %v1319
    %v1387 = vpop.f32.mrf.mxu0
    %v1388 = vadd.f32 0.0, %v1387
    %v1389 = vpop.f32.mrf.mxu0
    %1390 = vdwg.mxu0
    %1391 = vrot.lane.b32.xlu0 %v256, 120
    %v1392 = vpop.permute.xlu0 %1391
    %1393 = vrot.lane.b32.xlu0 %v256, 88
    %v1394 = vpop.permute.xlu0 %1393
    %v1395 = vsel %vm266, %v1392, 0
    %v1397 = vsel %vm266, %v1394, 0
    %1399 = vmatprep.subr.mxu0 0.0
    %1400 = vmatpush1.xpose.msra.mxu0 0.0
    %1401 = vmatprep.subr.mxu0 0.0
    %1402 = vmatpush1.xpose.msra.mxu0 0.0
    %1403 = vmatprep.subr.mxu0 0.0
    %1404 = vmatpush1.xpose.msra.mxu0 0.0
    %1405 = vmatprep.subr.mxu0 0.0
    %1406 = vmatpush1.xpose.msra.mxu0 0.0
    %1407 = vmatprep.subr.mxu0 0.0
    %1408 = vmatpush1.xpose.msra.mxu0 0.0
    %1409 = vmatprep.subr.mxu0 0.0
    %1410 = vmatpush1.xpose.msra.mxu0 0.0
    %1411 = vmatprep.subr.mxu0 0.0
    %1412 = vmatpush1.xpose.msra.mxu0 0.0
    %1413 = vmatprep.subr.mxu0 0.0
    %1414 = vmatpush1.xpose.msra.mxu0 0.0
    %1415 = vmatprep.subr.mxu0 0.0
    %1416 = vmatpush1.xpose.msra.mxu0 0.0
    %1417 = vmatprep.subr.mxu0 0.0
    %1418 = vmatpush1.xpose.msra.mxu0 0.0
    %1419 = vmatprep.subr.mxu0 0.0
    %1420 = vmatpush1.xpose.msra.mxu0 0.0
    %1421 = vmatprep.subr.mxu0 0.0
    %1422 = vmatpush1.xpose.msra.mxu0 0.0
    %1423 = vmatprep.subr.mxu0 0.0
    %1424 = vmatpush1.xpose.msra.mxu0 0.0
    %1425 = vmatprep.subr.mxu0 0.0
    %1426 = vmatpush1.xpose.msra.mxu0 0.0
    %1427 = vmatprep.subr.mxu0 0.0
    %1428 = vmatpush1.xpose.msra.mxu0 0.0
    %1429 = vmatprep.subr.mxu0 0.0
    %1430 = vmatpush1.xpose.msra.mxu0 %v1397
    %1431 = vmatprep.subr.mxu0 0.0
    %1432 = vmatpush2.xpose.msra.mxu0 0.0
    %1433 = vmatprep.subr.mxu0 0.0
    %1434 = vmatpush2.xpose.msra.mxu0 0.0
    %1435 = vmatprep.subr.mxu0 0.0
    %1436 = vmatpush2.xpose.msra.mxu0 0.0
    %1437 = vmatprep.subr.mxu0 0.0
    %1438 = vmatpush2.xpose.msra.mxu0 0.0
    %1439 = vmatprep.subr.mxu0 0.0
    %1440 = vmatpush2.xpose.msra.mxu0 0.0
    %1441 = vmatprep.subr.mxu0 0.0
    %1442 = vmatpush2.xpose.msra.mxu0 0.0
    %1443 = vmatprep.subr.mxu0 0.0
    %1444 = vmatpush2.xpose.msra.mxu0 0.0
    %1445 = vmatprep.subr.mxu0 0.0
    %1446 = vmatpush2.xpose.msra.mxu0 0.0
    %1447 = vmatprep.subr.mxu0 0.0
    %1448 = vmatpush2.xpose.msra.mxu0 0.0
    %1449 = vmatprep.subr.mxu0 0.0
    %1450 = vmatpush2.xpose.msra.mxu0 0.0
    %1451 = vmatprep.subr.mxu0 0.0
    %1452 = vmatpush2.xpose.msra.mxu0 0.0
    %1453 = vmatprep.subr.mxu0 0.0
    %1454 = vmatpush2.xpose.msra.mxu0 0.0
    %1455 = vmatprep.subr.mxu0 0.0
    %1456 = vmatpush2.xpose.msra.mxu0 0.0
    %1457 = vmatprep.subr.mxu0 0.0
    %1458 = vmatpush2.xpose.msra.mxu0 0.0
    %1459 = vmatprep.subr.mxu0 0.0
    %1460 = vmatpush2.xpose.msra.mxu0 0.0
    %1461 = vmatprep.subr.mxu0 0.0
    %1462 = vmatpush2.xpose.msra.mxu0 0.0
    %1463 = vmatprep.mubr.f32.mxu0 0.0
    %1464 = vmatmul.mubr.f32.gmra.mxu0 %v1395
    %v1465 = vpop.f32.mrf.mxu0
    %v1466 = vadd.f32 0.0, %v1465
    %v1467 = vpop.f32.mrf.mxu0
    %1468 = vdwg.mxu0
    %v1469 = vmul.f32 %v1466, 0.35355338
    %v1470 = vadd.f32 %v1469, %v65
    %v1471 = vsel %vm266, %v1470, -inf
    %1472 = vmax.xlane.f32.xlu0 %v1471
    %v1473 = vpop.xlane.xlu0 %1472
    %v1474 = vsub.f32 %v1470, %v1473
    %v1475 = vmul.f32 %v1474, 1.442695
    %v1476 = vpow.pop %v1475
    %v1477 = vsel %vm266, %v1476, 0.0
    %1478 = vadd.xlane.f32.xlu0 %v1477
    %v1479 = vpop.xlane.xlu0 %1478
    %v1480 = vrcp.pop %v1479
    %v1481 = vmul.f32 %v1476, %v1480
    %1482 = vrot.lane.b32.xlu0 %v256, 56
    %v1483 = vpop.permute.xlu0 %1482
    %v1486 = vsel %vm266, %v1481, 0
    %1488 = vmatprep.subr.mxu0 0.0
    %1489 = vmatpush1.msra.mxu0 0.0
    %1490 = vmatprep.subr.mxu0 0.0
    %1491 = vmatpush1.msra.mxu0 0.0
    %1492 = vmatprep.subr.mxu0 0.0
    %1493 = vmatpush1.msra.mxu0 0.0
    %1494 = vmatprep.subr.mxu0 0.0
    %1495 = vmatpush1.msra.mxu0 0.0
    %1496 = vmatprep.subr.mxu0 0.0
    %1497 = vmatpush1.msra.mxu0 0.0
    %1498 = vmatprep.subr.mxu0 0.0
    %1499 = vmatpush1.msra.mxu0 0.0
    %1500 = vmatprep.subr.mxu0 0.0
    %1501 = vmatpush1.msra.mxu0 0.0
    %1502 = vmatprep.subr.mxu0 0.0
    %1503 = vmatpush1.msra.mxu0 0.0
    %1504 = vmatprep.subr.mxu0 0.0
    %1505 = vmatpush1.msra.mxu0 0.0
    %1506 = vmatprep.subr.mxu0 0.0
    %1507 = vmatpush1.msra.mxu0 0.0
    %1508 = vmatprep.subr.mxu0 0.0
    %1509 = vmatpush1.msra.mxu0 0.0
    %1510 = vmatprep.subr.mxu0 0.0
    %1511 = vmatpush1.msra.mxu0 0.0
    %1512 = vmatprep.subr.mxu0 0.0
    %1513 = vmatpush1.msra.mxu0 0.0
    %1514 = vmatprep.subr.mxu0 0.0
    %1515 = vmatpush1.msra.mxu0 0.0
    %1516 = vmatprep.subr.mxu0 0.0
    %1517 = vmatpush1.msra.mxu0 0.0
    %1518 = vmatprep.subr.mxu0 0.0
    %1519 = vmatpush1.msra.mxu0 %v1483
    %1520 = vmatprep.subr.mxu0 0.0
    %1521 = vmatpush2.msra.mxu0 0.0
    %1522 = vmatprep.subr.mxu0 0.0
    %1523 = vmatpush2.msra.mxu0 0.0
    %1524 = vmatprep.subr.mxu0 0.0
    %1525 = vmatpush2.msra.mxu0 0.0
    %1526 = vmatprep.subr.mxu0 0.0
    %1527 = vmatpush2.msra.mxu0 0.0
    %1528 = vmatprep.subr.mxu0 0.0
    %1529 = vmatpush2.msra.mxu0 0.0
    %1530 = vmatprep.subr.mxu0 0.0
    %1531 = vmatpush2.msra.mxu0 0.0
    %1532 = vmatprep.subr.mxu0 0.0
    %1533 = vmatpush2.msra.mxu0 0.0
    %1534 = vmatprep.subr.mxu0 0.0
    %1535 = vmatpush2.msra.mxu0 0.0
    %1536 = vmatprep.subr.mxu0 0.0
    %1537 = vmatpush2.msra.mxu0 0.0
    %1538 = vmatprep.subr.mxu0 0.0
    %1539 = vmatpush2.msra.mxu0 0.0
    %1540 = vmatprep.subr.mxu0 0.0
    %1541 = vmatpush2.msra.mxu0 0.0
    %1542 = vmatprep.subr.mxu0 0.0
    %1543 = vmatpush2.msra.mxu0 0.0
    %1544 = vmatprep.subr.mxu0 0.0
    %1545 = vmatpush2.msra.mxu0 0.0
    %1546 = vmatprep.subr.mxu0 0.0
    %1547 = vmatpush2.msra.mxu0 0.0
    %1548 = vmatprep.subr.mxu0 0.0
    %1549 = vmatpush2.msra.mxu0 0.0
    %1550 = vmatprep.subr.mxu0 0.0
    %1551 = vmatpush2.msra.mxu0 0.0
    %1552 = vmatprep.mubr.f32.mxu0 0.0
    %1553 = vmatmul.mubr.f32.gmra.mxu0 %v1486
    %v1554 = vpop.f32.mrf.mxu0
    %v1555 = vadd.f32 0.0, %v1554
    %v1556 = vpop.f32.mrf.mxu0
    %1557 = vdwg.mxu0
    %v1559 = vsel %vm266, %v1555, 0
    %1561 = vmatprep.subr.mxu0 0.0
    %1562 = vmatpush1.msra.mxu0 0.0
    %1563 = vmatprep.subr.mxu0 0.0
    %1564 = vmatpush1.msra.mxu0 0.0
    %1565 = vmatprep.subr.mxu0 0.0
    %1566 = vmatpush1.msra.mxu0 0.0
    %1567 = vmatprep.subr.mxu0 0.0
    %1568 = vmatpush1.msra.mxu0 0.0
    %1569 = vmatprep.subr.mxu0 0.0
    %1570 = vmatpush1.msra.mxu0 0.0
    %1571 = vmatprep.subr.mxu0 0.0
    %1572 = vmatpush1.msra.mxu0 0.0
    %1573 = vmatprep.subr.mxu0 0.0
    %1574 = vmatpush1.msra.mxu0 0.0
    %1575 = vmatprep.subr.mxu0 0.0
    %1576 = vmatpush1.msra.mxu0 0.0
    %1577 = vmatprep.subr.mxu0 0.0
    %1578 = vmatpush1.msra.mxu0 0.0
    %1579 = vmatprep.subr.mxu0 0.0
    %1580 = vmatpush1.msra.mxu0 0.0
    %1581 = vmatprep.subr.mxu0 0.0
    %1582 = vmatpush1.msra.mxu0 0.0
    %1583 = vmatprep.subr.mxu0 0.0
    %1584 = vmatpush1.msra.mxu0 0.0
    %1585 = vmatprep.subr.mxu0 0.0
    %1586 = vmatpush1.msra.mxu0 0.0
    %1587 = vmatprep.subr.mxu0 0.0
    %1588 = vmatpush1.msra.mxu0 0.0
    %1589 = vmatprep.subr.mxu0 0.0
    %1590 = vmatpush1.msra.mxu0 0.0
    %1591 = vmatprep.subr.mxu0 0.0
    %1592 = vmatpush1.msra.mxu0 %v260
    %1593 = vmatprep.subr.mxu0 0.0
    %1594 = vmatpush2.msra.mxu0 0.0
    %1595 = vmatprep.subr.mxu0 0.0
    %1596 = vmatpush2.msra.mxu0 0.0
    %1597 = vmatprep.subr.mxu0 0.0
    %1598 = vmatpush2.msra.mxu0 0.0
    %1599 = vmatprep.subr.mxu0 0.0
    %1600 = vmatpush2.msra.mxu0 0.0
    %1601 = vmatprep.subr.mxu0 0.0
    %1602 = vmatpush2.msra.mxu0 0.0
    %1603 = vmatprep.subr.mxu0 0.0
    %1604 = vmatpush2.msra.mxu0 0.0
    %1605 = vmatprep.subr.mxu0 0.0
    %1606 = vmatpush2.msra.mxu0 0.0
    %1607 = vmatprep.subr.mxu0 0.0
    %1608 = vmatpush2.msra.mxu0 0.0
    %1609 = vmatprep.subr.mxu0 0.0
    %1610 = vmatpush2.msra.mxu0 0.0
    %1611 = vmatprep.subr.mxu0 0.0
    %1612 = vmatpush2.msra.mxu0 0.0
    %1613 = vmatprep.subr.mxu0 0.0
    %1614 = vmatpush2.msra.mxu0 0.0
    %1615 = vmatprep.subr.mxu0 0.0
    %1616 = vmatpush2.msra.mxu0 0.0
    %1617 = vmatprep.subr.mxu0 0.0
    %1618 = vmatpush2.msra.mxu0 0.0
    %1619 = vmatprep.subr.mxu0 0.0
    %1620 = vmatpush2.msra.mxu0 0.0
    %1621 = vmatprep.subr.mxu0 0.0
    %1622 = vmatpush2.msra.mxu0 0.0
    %1623 = vmatprep.subr.mxu0 0.0
    %1624 = vmatpush2.msra.mxu0 0.0
    %1625 = vmatprep.mubr.f32.mxu0 0.0
    %1626 = vmatmul.mubr.f32.gmra.mxu0 %v1559
    %v1627 = vpop.f32.mrf.mxu0
    %v1628 = vadd.f32 0.0, %v1627
    %v1629 = vpop.f32.mrf.mxu0
    %1630 = vdwg.mxu0
    %v1632 = vsel %vm266, %v1388, 0
    %1634 = vmatprep.subr.mxu0 0.0
    %1635 = vmatpush1.msra.mxu0 0.0
    %1636 = vmatprep.subr.mxu0 0.0
    %1637 = vmatpush1.msra.mxu0 0.0
    %1638 = vmatprep.subr.mxu0 0.0
    %1639 = vmatpush1.msra.mxu0 0.0
    %1640 = vmatprep.subr.mxu0 0.0
    %1641 = vmatpush1.msra.mxu0 0.0
    %1642 = vmatprep.subr.mxu0 0.0
    %1643 = vmatpush1.msra.mxu0 0.0
    %1644 = vmatprep.subr.mxu0 0.0
    %1645 = vmatpush1.msra.mxu0 0.0
    %1646 = vmatprep.subr.mxu0 0.0
    %1647 = vmatpush1.msra.mxu0 0.0
    %1648 = vmatprep.subr.mxu0 0.0
    %1649 = vmatpush1.msra.mxu0 0.0
    %1650 = vmatprep.subr.mxu0 0.0
    %1651 = vmatpush1.msra.mxu0 0.0
    %1652 = vmatprep.subr.mxu0 0.0
    %1653 = vmatpush1.msra.mxu0 0.0
    %1654 = vmatprep.subr.mxu0 0.0
    %1655 = vmatpush1.msra.mxu0 0.0
    %1656 = vmatprep.subr.mxu0 0.0
    %1657 = vmatpush1.msra.mxu0 0.0
    %1658 = vmatprep.subr.mxu0 0.0
    %1659 = vmatpush1.msra.mxu0 0.0
    %1660 = vmatprep.subr.mxu0 0.0
    %1661 = vmatpush1.msra.mxu0 0.0
    %1662 = vmatprep.subr.mxu0 0.0
    %1663 = vmatpush1.msra.mxu0 0.0
    %1664 = vmatprep.subr.mxu0 0.0
    %1665 = vmatpush1.msra.mxu0 %v259
    %1666 = vmatprep.subr.mxu0 0.0
    %1667 = vmatpush2.msra.mxu0 0.0
    %1668 = vmatprep.subr.mxu0 0.0
    %1669 = vmatpush2.msra.mxu0 0.0
    %1670 = vmatprep.subr.mxu0 0.0
    %1671 = vmatpush2.msra.mxu0 0.0
    %1672 = vmatprep.subr.mxu0 0.0
    %1673 = vmatpush2.msra.mxu0 0.0
    %1674 = vmatprep.subr.mxu0 0.0
    %1675 = vmatpush2.msra.mxu0 0.0
    %1676 = vmatprep.subr.mxu0 0.0
    %1677 = vmatpush2.msra.mxu0 0.0
    %1678 = vmatprep.subr.mxu0 0.0
    %1679 = vmatpush2.msra.mxu0 0.0
    %1680 = vmatprep.subr.mxu0 0.0
    %1681 = vmatpush2.msra.mxu0 0.0
    %1682 = vmatprep.subr.mxu0 0.0
    %1683 = vmatpush2.msra.mxu0 0.0
    %1684 = vmatprep.subr.mxu0 0.0
    %1685 = vmatpush2.msra.mxu0 0.0
    %1686 = vmatprep.subr.mxu0 0.0
    %1687 = vmatpush2.msra.mxu0 0.0
    %1688 = vmatprep.subr.mxu0 0.0
    %1689 = vmatpush2.msra.mxu0 0.0
    %1690 = vmatprep.subr.mxu0 0.0
    %1691 = vmatpush2.msra.mxu0 0.0
    %1692 = vmatprep.subr.mxu0 0.0
    %1693 = vmatpush2.msra.mxu0 0.0
    %1694 = vmatprep.subr.mxu0 0.0
    %1695 = vmatpush2.msra.mxu0 0.0
    %1696 = vmatprep.subr.mxu0 0.0
    %1697 = vmatpush2.msra.mxu0 0.0
    %1698 = vmatprep.mubr.f32.mxu0 0.0
    %1699 = vmatmul.mubr.f32.gmra.mxu0 %v1632
    %v1700 = vpop.f32.mrf.mxu0
    %v1701 = vadd.f32 %v1628, %v1700
    %v1702 = vpop.f32.mrf.mxu0
    %1703 = vdwg.mxu0
    %1704 = vrot.lane.b32.xlu0 %v256, 112
    %v1705 = vpop.permute.xlu0 %1704
    %1706 = vrot.lane.b32.xlu0 %v256, 80
    %v1707 = vpop.permute.xlu0 %1706
    %v1708 = vsel %vm266, %v1705, 0
    %v1710 = vsel %vm266, %v1707, 0
    %1712 = vmatprep.subr.mxu0 0.0
    %1713 = vmatpush1.xpose.msra.mxu0 0.0
    %1714 = vmatprep.subr.mxu0 0.0
    %1715 = vmatpush1.xpose.msra.mxu0 0.0
    %1716 = vmatprep.subr.mxu0 0.0
    %1717 = vmatpush1.xpose.msra.mxu0 0.0
    %1718 = vmatprep.subr.mxu0 0.0
    %1719 = vmatpush1.xpose.msra.mxu0 0.0
    %1720 = vmatprep.subr.mxu0 0.0
    %1721 = vmatpush1.xpose.msra.mxu0 0.0
    %1722 = vmatprep.subr.mxu0 0.0
    %1723 = vmatpush1.xpose.msra.mxu0 0.0
    %1724 = vmatprep.subr.mxu0 0.0
    %1725 = vmatpush1.xpose.msra.mxu0 0.0
    %1726 = vmatprep.subr.mxu0 0.0
    %1727 = vmatpush1.xpose.msra.mxu0 0.0
    %1728 = vmatprep.subr.mxu0 0.0
    %1729 = vmatpush1.xpose.msra.mxu0 0.0
    %1730 = vmatprep.subr.mxu0 0.0
    %1731 = vmatpush1.xpose.msra.mxu0 0.0
    %1732 = vmatprep.subr.mxu0 0.0
    %1733 = vmatpush1.xpose.msra.mxu0 0.0
    %1734 = vmatprep.subr.mxu0 0.0
    %1735 = vmatpush1.xpose.msra.mxu0 0.0
    %1736 = vmatprep.subr.mxu0 0.0
    %1737 = vmatpush1.xpose.msra.mxu0 0.0
    %1738 = vmatprep.subr.mxu0 0.0
    %1739 = vmatpush1.xpose.msra.mxu0 0.0
    %1740 = vmatprep.subr.mxu0 0.0
    %1741 = vmatpush1.xpose.msra.mxu0 0.0
    %1742 = vmatprep.subr.mxu0 0.0
    %1743 = vmatpush1.xpose.msra.mxu0 %v1710
    %1744 = vmatprep.subr.mxu0 0.0
    %1745 = vmatpush2.xpose.msra.mxu0 0.0
    %1746 = vmatprep.subr.mxu0 0.0
    %1747 = vmatpush2.xpose.msra.mxu0 0.0
    %1748 = vmatprep.subr.mxu0 0.0
    %1749 = vmatpush2.xpose.msra.mxu0 0.0
    %1750 = vmatprep.subr.mxu0 0.0
    %1751 = vmatpush2.xpose.msra.mxu0 0.0
    %1752 = vmatprep.subr.mxu0 0.0
    %1753 = vmatpush2.xpose.msra.mxu0 0.0
    %1754 = vmatprep.subr.mxu0 0.0
    %1755 = vmatpush2.xpose.msra.mxu0 0.0
    %1756 = vmatprep.subr.mxu0 0.0
    %1757 = vmatpush2.xpose.msra.mxu0 0.0
    %1758 = vmatprep.subr.mxu0 0.0
    %1759 = vmatpush2.xpose.msra.mxu0 0.0
    %1760 = vmatprep.subr.mxu0 0.0
    %1761 = vmatpush2.xpose.msra.mxu0 0.0
    %1762 = vmatprep.subr.mxu0 0.0
    %1763 = vmatpush2.xpose.msra.mxu0 0.0
    %1764 = vmatprep.subr.mxu0 0.0
    %1765 = vmatpush2.xpose.msra.mxu0 0.0
    %1766 = vmatprep.subr.mxu0 0.0
    %1767 = vmatpush2.xpose.msra.mxu0 0.0
    %1768 = vmatprep.subr.mxu0 0.0
    %1769 = vmatpush2.xpose.msra.mxu0 0.0
    %1770 = vmatprep.subr.mxu0 0.0
    %1771 = vmatpush2.xpose.msra.mxu0 0.0
    %1772 = vmatprep.subr.mxu0 0.0
    %1773 = vmatpush2.xpose.msra.mxu0 0.0
    %1774 = vmatprep.subr.mxu0 0.0
    %1775 = vmatpush2.xpose.msra.mxu0 0.0
    %1776 = vmatprep.mubr.f32.mxu0 0.0
    %1777 = vmatmul.mubr.f32.gmra.mxu0 %v1708
    %v1778 = vpop.f32.mrf.mxu0
    %v1779 = vadd.f32 0.0, %v1778
    %v1780 = vpop.f32.mrf.mxu0
    %1781 = vdwg.mxu0
    %v1782 = vmul.f32 %v1779, 0.35355338
    %v1783 = vadd.f32 %v1782, %v65
    %v1784 = vsel %vm266, %v1783, -inf
    %1785 = vmax.xlane.f32.xlu0 %v1784
    %v1786 = vpop.xlane.xlu0 %1785
    %v1787 = vsub.f32 %v1783, %v1786
    %v1788 = vmul.f32 %v1787, 1.442695
    %v1789 = vpow.pop %v1788
    %v1790 = vsel %vm266, %v1789, 0.0
    %1791 = vadd.xlane.f32.xlu0 %v1790
    %v1792 = vpop.xlane.xlu0 %1791
    %v1793 = vrcp.pop %v1792
    %v1794 = vmul.f32 %v1789, %v1793
    %1795 = vrot.lane.b32.xlu0 %v256, 48
    %v1796 = vpop.permute.xlu0 %1795
    %v1799 = vsel %vm266, %v1794, 0
    %1801 = vmatprep.subr.mxu0 0.0
    %1802 = vmatpush1.msra.mxu0 0.0
    %1803 = vmatprep.subr.mxu0 0.0
    %1804 = vmatpush1.msra.mxu0 0.0
    %1805 = vmatprep.subr.mxu0 0.0
    %1806 = vmatpush1.msra.mxu0 0.0
    %1807 = vmatprep.subr.mxu0 0.0
    %1808 = vmatpush1.msra.mxu0 0.0
    %1809 = vmatprep.subr.mxu0 0.0
    %1810 = vmatpush1.msra.mxu0 0.0
    %1811 = vmatprep.subr.mxu0 0.0
    %1812 = vmatpush1.msra.mxu0 0.0
    %1813 = vmatprep.subr.mxu0 0.0
    %1814 = vmatpush1.msra.mxu0 0.0
    %1815 = vmatprep.subr.mxu0 0.0
    %1816 = vmatpush1.msra.mxu0 0.0
    %1817 = vmatprep.subr.mxu0 0.0
    %1818 = vmatpush1.msra.mxu0 0.0
    %1819 = vmatprep.subr.mxu0 0.0
    %1820 = vmatpush1.msra.mxu0 0.0
    %1821 = vmatprep.subr.mxu0 0.0
    %1822 = vmatpush1.msra.mxu0 0.0
    %1823 = vmatprep.subr.mxu0 0.0
    %1824 = vmatpush1.msra.mxu0 0.0
    %1825 = vmatprep.subr.mxu0 0.0
    %1826 = vmatpush1.msra.mxu0 0.0
    %1827 = vmatprep.subr.mxu0 0.0
    %1828 = vmatpush1.msra.mxu0 0.0
    %1829 = vmatprep.subr.mxu0 0.0
    %1830 = vmatpush1.msra.mxu0 0.0
    %1831 = vmatprep.subr.mxu0 0.0
    %1832 = vmatpush1.msra.mxu0 %v1796
    %1833 = vmatprep.subr.mxu0 0.0
    %1834 = vmatpush2.msra.mxu0 0.0
    %1835 = vmatprep.subr.mxu0 0.0
    %1836 = vmatpush2.msra.mxu0 0.0
    %1837 = vmatprep.subr.mxu0 0.0
    %1838 = vmatpush2.msra.mxu0 0.0
    %1839 = vmatprep.subr.mxu0 0.0
    %1840 = vmatpush2.msra.mxu0 0.0
    %1841 = vmatprep.subr.mxu0 0.0
    %1842 = vmatpush2.msra.mxu0 0.0
    %1843 = vmatprep.subr.mxu0 0.0
    %1844 = vmatpush2.msra.mxu0 0.0
    %1845 = vmatprep.subr.mxu0 0.0
    %1846 = vmatpush2.msra.mxu0 0.0
    %1847 = vmatprep.subr.mxu0 0.0
    %1848 = vmatpush2.msra.mxu0 0.0
    %1849 = vmatprep.subr.mxu0 0.0
    %1850 = vmatpush2.msra.mxu0 0.0
    %1851 = vmatprep.subr.mxu0 0.0
    %1852 = vmatpush2.msra.mxu0 0.0
    %1853 = vmatprep.subr.mxu0 0.0
    %1854 = vmatpush2.msra.mxu0 0.0
    %1855 = vmatprep.subr.mxu0 0.0
    %1856 = vmatpush2.msra.mxu0 0.0
    %1857 = vmatprep.subr.mxu0 0.0
    %1858 = vmatpush2.msra.mxu0 0.0
    %1859 = vmatprep.subr.mxu0 0.0
    %1860 = vmatpush2.msra.mxu0 0.0
    %1861 = vmatprep.subr.mxu0 0.0
    %1862 = vmatpush2.msra.mxu0 0.0
    %1863 = vmatprep.subr.mxu0 0.0
    %1864 = vmatpush2.msra.mxu0 0.0
    %1865 = vmatprep.mubr.f32.mxu0 0.0
    %1866 = vmatmul.mubr.f32.gmra.mxu0 %v1799
    %v1867 = vpop.f32.mrf.mxu0
    %v1868 = vadd.f32 0.0, %v1867
    %v1869 = vpop.f32.mrf.mxu0
    %1870 = vdwg.mxu0
    %v1872 = vsel %vm266, %v1868, 0
    %1874 = vmatprep.subr.mxu0 0.0
    %1875 = vmatpush1.msra.mxu0 0.0
    %1876 = vmatprep.subr.mxu0 0.0
    %1877 = vmatpush1.msra.mxu0 0.0
    %1878 = vmatprep.subr.mxu0 0.0
    %1879 = vmatpush1.msra.mxu0 0.0
    %1880 = vmatprep.subr.mxu0 0.0
    %1881 = vmatpush1.msra.mxu0 0.0
    %1882 = vmatprep.subr.mxu0 0.0
    %1883 = vmatpush1.msra.mxu0 0.0
    %1884 = vmatprep.subr.mxu0 0.0
    %1885 = vmatpush1.msra.mxu0 0.0
    %1886 = vmatprep.subr.mxu0 0.0
    %1887 = vmatpush1.msra.mxu0 0.0
    %1888 = vmatprep.subr.mxu0 0.0
    %1889 = vmatpush1.msra.mxu0 0.0
    %1890 = vmatprep.subr.mxu0 0.0
    %1891 = vmatpush1.msra.mxu0 0.0
    %1892 = vmatprep.subr.mxu0 0.0
    %1893 = vmatpush1.msra.mxu0 0.0
    %1894 = vmatprep.subr.mxu0 0.0
    %1895 = vmatpush1.msra.mxu0 0.0
    %1896 = vmatprep.subr.mxu0 0.0
    %1897 = vmatpush1.msra.mxu0 0.0
    %1898 = vmatprep.subr.mxu0 0.0
    %1899 = vmatpush1.msra.mxu0 0.0
    %1900 = vmatprep.subr.mxu0 0.0
    %1901 = vmatpush1.msra.mxu0 0.0
    %1902 = vmatprep.subr.mxu0 0.0
    %1903 = vmatpush1.msra.mxu0 0.0
    %1904 = vmatprep.subr.mxu0 0.0
    %1905 = vmatpush1.msra.mxu0 %v261
    %1906 = vmatprep.subr.mxu0 0.0
    %1907 = vmatpush2.msra.mxu0 0.0
    %1908 = vmatprep.subr.mxu0 0.0
    %1909 = vmatpush2.msra.mxu0 0.0
    %1910 = vmatprep.subr.mxu0 0.0
    %1911 = vmatpush2.msra.mxu0 0.0
    %1912 = vmatprep.subr.mxu0 0.0
    %1913 = vmatpush2.msra.mxu0 0.0
    %1914 = vmatprep.subr.mxu0 0.0
    %1915 = vmatpush2.msra.mxu0 0.0
    %1916 = vmatprep.subr.mxu0 0.0
    %1917 = vmatpush2.msra.mxu0 0.0
    %1918 = vmatprep.subr.mxu0 0.0
    %1919 = vmatpush2.msra.mxu0 0.0
    %1920 = vmatprep.subr.mxu0 0.0
    %1921 = vmatpush2.msra.mxu0 0.0
    %1922 = vmatprep.subr.mxu0 0.0
    %1923 = vmatpush2.msra.mxu0 0.0
    %1924 = vmatprep.subr.mxu0 0.0
    %1925 = vmatpush2.msra.mxu0 0.0
    %1926 = vmatprep.subr.mxu0 0.0
    %1927 = vmatpush2.msra.mxu0 0.0
    %1928 = vmatprep.subr.mxu0 0.0
    %1929 = vmatpush2.msra.mxu0 0.0
    %1930 = vmatprep.subr.mxu0 0.0
    %1931 = vmatpush2.msra.mxu0 0.0
    %1932 = vmatprep.subr.mxu0 0.0
    %1933 = vmatpush2.msra.mxu0 0.0
    %1934 = vmatprep.subr.mxu0 0.0
    %1935 = vmatpush2.msra.mxu0 0.0
    %1936 = vmatprep.subr.mxu0 0.0
    %1937 = vmatpush2.msra.mxu0 0.0
    %1938 = vmatprep.mubr.f32.mxu0 0.0
    %1939 = vmatmul.mubr.f32.gmra.mxu0 %v1872
    %v1940 = vpop.f32.mrf.mxu0
    %v1941 = vadd.f32 0.0, %v1940
    %v1942 = vpop.f32.mrf.mxu0
    %1943 = vdwg.mxu0
    %v1944 = vadd.f32 %v1701, %v1941
    %1945 = vrot.lane.b32.xlu0 %v256, 104
    %v1946 = vpop.permute.xlu0 %1945
    %1947 = vrot.lane.b32.xlu0 %v256, 72
    %v1948 = vpop.permute.xlu0 %1947
    %v1949 = vsel %vm266, %v1946, 0
    %v1951 = vsel %vm266, %v1948, 0
    %1953 = vmatprep.subr.mxu0 0.0
    %1954 = vmatpush1.xpose.msra.mxu0 0.0
    %1955 = vmatprep.subr.mxu0 0.0
    %1956 = vmatpush1.xpose.msra.mxu0 0.0
    %1957 = vmatprep.subr.mxu0 0.0
    %1958 = vmatpush1.xpose.msra.mxu0 0.0
    %1959 = vmatprep.subr.mxu0 0.0
    %1960 = vmatpush1.xpose.msra.mxu0 0.0
    %1961 = vmatprep.subr.mxu0 0.0
    %1962 = vmatpush1.xpose.msra.mxu0 0.0
    %1963 = vmatprep.subr.mxu0 0.0
    %1964 = vmatpush1.xpose.msra.mxu0 0.0
    %1965 = vmatprep.subr.mxu0 0.0
    %1966 = vmatpush1.xpose.msra.mxu0 0.0
    %1967 = vmatprep.subr.mxu0 0.0
    %1968 = vmatpush1.xpose.msra.mxu0 0.0
    %1969 = vmatprep.subr.mxu0 0.0
    %1970 = vmatpush1.xpose.msra.mxu0 0.0
    %1971 = vmatprep.subr.mxu0 0.0
    %1972 = vmatpush1.xpose.msra.mxu0 0.0
    %1973 = vmatprep.subr.mxu0 0.0
    %1974 = vmatpush1.xpose.msra.mxu0 0.0
    %1975 = vmatprep.subr.mxu0 0.0
    %1976 = vmatpush1.xpose.msra.mxu0 0.0
    %1977 = vmatprep.subr.mxu0 0.0
    %1978 = vmatpush1.xpose.msra.mxu0 0.0
    %1979 = vmatprep.subr.mxu0 0.0
    %1980 = vmatpush1.xpose.msra.mxu0 0.0
    %1981 = vmatprep.subr.mxu0 0.0
    %1982 = vmatpush1.xpose.msra.mxu0 0.0
    %1983 = vmatprep.subr.mxu0 0.0
    %1984 = vmatpush1.xpose.msra.mxu0 %v1951
    %1985 = vmatprep.subr.mxu0 0.0
    %1986 = vmatpush2.xpose.msra.mxu0 0.0
    %1987 = vmatprep.subr.mxu0 0.0
    %1988 = vmatpush2.xpose.msra.mxu0 0.0
    %1989 = vmatprep.subr.mxu0 0.0
    %1990 = vmatpush2.xpose.msra.mxu0 0.0
    %1991 = vmatprep.subr.mxu0 0.0
    %1992 = vmatpush2.xpose.msra.mxu0 0.0
    %1993 = vmatprep.subr.mxu0 0.0
    %1994 = vmatpush2.xpose.msra.mxu0 0.0
    %1995 = vmatprep.subr.mxu0 0.0
    %1996 = vmatpush2.xpose.msra.mxu0 0.0
    %1997 = vmatprep.subr.mxu0 0.0
    %1998 = vmatpush2.xpose.msra.mxu0 0.0
    %1999 = vmatprep.subr.mxu0 0.0
    %2000 = vmatpush2.xpose.msra.mxu0 0.0
    %2001 = vmatprep.subr.mxu0 0.0
    %2002 = vmatpush2.xpose.msra.mxu0 0.0
    %2003 = vmatprep.subr.mxu0 0.0
    %2004 = vmatpush2.xpose.msra.mxu0 0.0
    %2005 = vmatprep.subr.mxu0 0.0
    %2006 = vmatpush2.xpose.msra.mxu0 0.0
    %2007 = vmatprep.subr.mxu0 0.0
    %2008 = vmatpush2.xpose.msra.mxu0 0.0
    %2009 = vmatprep.subr.mxu0 0.0
    %2010 = vmatpush2.xpose.msra.mxu0 0.0
    %2011 = vmatprep.subr.mxu0 0.0
    %2012 = vmatpush2.xpose.msra.mxu0 0.0
    %2013 = vmatprep.subr.mxu0 0.0
    %2014 = vmatpush2.xpose.msra.mxu0 0.0
    %2015 = vmatprep.subr.mxu0 0.0
    %2016 = vmatpush2.xpose.msra.mxu0 0.0
    %2017 = vmatprep.mubr.f32.mxu0 0.0
    %2018 = vmatmul.mubr.f32.gmra.mxu0 %v1949
    %v2019 = vpop.f32.mrf.mxu0
    %v2020 = vadd.f32 0.0, %v2019
    %v2021 = vpop.f32.mrf.mxu0
    %2022 = vdwg.mxu0
    %v2023 = vmul.f32 %v2020, 0.35355338
    %v2024 = vadd.f32 %v2023, %v65
    %v2025 = vsel %vm266, %v2024, -inf
    %2026 = vmax.xlane.f32.xlu0 %v2025
    %v2027 = vpop.xlane.xlu0 %2026
    %v2028 = vsub.f32 %v2024, %v2027
    %v2029 = vmul.f32 %v2028, 1.442695
    %v2030 = vpow.pop %v2029
    %v2031 = vsel %vm266, %v2030, 0.0
    %2032 = vadd.xlane.f32.xlu0 %v2031
    %v2033 = vpop.xlane.xlu0 %2032
    %v2034 = vrcp.pop %v2033
    %v2035 = vmul.f32 %v2030, %v2034
    %2036 = vrot.lane.b32.xlu0 %v256, 40
    %v2037 = vpop.permute.xlu0 %2036
    %v2040 = vsel %vm266, %v2035, 0
    %2042 = vmatprep.subr.mxu0 0.0
    %2043 = vmatpush1.msra.mxu0 0.0
    %2044 = vmatprep.subr.mxu0 0.0
    %2045 = vmatpush1.msra.mxu0 0.0
    %2046 = vmatprep.subr.mxu0 0.0
    %2047 = vmatpush1.msra.mxu0 0.0
    %2048 = vmatprep.subr.mxu0 0.0
    %2049 = vmatpush1.msra.mxu0 0.0
    %2050 = vmatprep.subr.mxu0 0.0
    %2051 = vmatpush1.msra.mxu0 0.0
    %2052 = vmatprep.subr.mxu0 0.0
    %2053 = vmatpush1.msra.mxu0 0.0
    %2054 = vmatprep.subr.mxu0 0.0
    %2055 = vmatpush1.msra.mxu0 0.0
    %2056 = vmatprep.subr.mxu0 0.0
    %2057 = vmatpush1.msra.mxu0 0.0
    %2058 = vmatprep.subr.mxu0 0.0
    %2059 = vmatpush1.msra.mxu0 0.0
    %2060 = vmatprep.subr.mxu0 0.0
    %2061 = vmatpush1.msra.mxu0 0.0
    %2062 = vmatprep.subr.mxu0 0.0
    %2063 = vmatpush1.msra.mxu0 0.0
    %2064 = vmatprep.subr.mxu0 0.0
    %2065 = vmatpush1.msra.mxu0 0.0
    %2066 = vmatprep.subr.mxu0 0.0
    %2067 = vmatpush1.msra.mxu0 0.0
    %2068 = vmatprep.subr.mxu0 0.0
    %2069 = vmatpush1.msra.mxu0 0.0
    %2070 = vmatprep.subr.mxu0 0.0
    %2071 = vmatpush1.msra.mxu0 0.0
    %2072 = vmatprep.subr.mxu0 0.0
    %2073 = vmatpush1.msra.mxu0 %v2037
    %2074 = vmatprep.subr.mxu0 0.0
    %2075 = vmatpush2.msra.mxu0 0.0
    %2076 = vmatprep.subr.mxu0 0.0
    %2077 = vmatpush2.msra.mxu0 0.0
    %2078 = vmatprep.subr.mxu0 0.0
    %2079 = vmatpush2.msra.mxu0 0.0
    %2080 = vmatprep.subr.mxu0 0.0
    %2081 = vmatpush2.msra.mxu0 0.0
    %2082 = vmatprep.subr.mxu0 0.0
    %2083 = vmatpush2.msra.mxu0 0.0
    %2084 = vmatprep.subr.mxu0 0.0
    %2085 = vmatpush2.msra.mxu0 0.0
    %2086 = vmatprep.subr.mxu0 0.0
    %2087 = vmatpush2.msra.mxu0 0.0
    %2088 = vmatprep.subr.mxu0 0.0
    %2089 = vmatpush2.msra.mxu0 0.0
    %2090 = vmatprep.subr.mxu0 0.0
    %2091 = vmatpush2.msra.mxu0 0.0
    %2092 = vmatprep.subr.mxu0 0.0
    %2093 = vmatpush2.msra.mxu0 0.0
    %2094 = vmatprep.subr.mxu0 0.0
    %2095 = vmatpush2.msra.mxu0 0.0
    %2096 = vmatprep.subr.mxu0 0.0
    %2097 = vmatpush2.msra.mxu0 0.0
    %2098 = vmatprep.subr.mxu0 0.0
    %2099 = vmatpush2.msra.mxu0 0.0
    %2100 = vmatprep.subr.mxu0 0.0
    %2101 = vmatpush2.msra.mxu0 0.0
    %2102 = vmatprep.subr.mxu0 0.0
    %2103 = vmatpush2.msra.mxu0 0.0
    %2104 = vmatprep.subr.mxu0 0.0
    %2105 = vmatpush2.msra.mxu0 0.0
    %2106 = vmatprep.mubr.f32.mxu0 0.0
    %2107 = vmatmul.mubr.f32.gmra.mxu0 %v2040
    %v2108 = vpop.f32.mrf.mxu0
    %v2109 = vadd.f32 0.0, %v2108
    %v2110 = vpop.f32.mrf.mxu0
    %2111 = vdwg.mxu0
    %v2113 = vsel %vm266, %v2109, 0
    %2115 = vmatprep.subr.mxu0 0.0
    %2116 = vmatpush1.msra.mxu0 0.0
    %2117 = vmatprep.subr.mxu0 0.0
    %2118 = vmatpush1.msra.mxu0 0.0
    %2119 = vmatprep.subr.mxu0 0.0
    %2120 = vmatpush1.msra.mxu0 0.0
    %2121 = vmatprep.subr.mxu0 0.0
    %2122 = vmatpush1.msra.mxu0 0.0
    %2123 = vmatprep.subr.mxu0 0.0
    %2124 = vmatpush1.msra.mxu0 0.0
    %2125 = vmatprep.subr.mxu0 0.0
    %2126 = vmatpush1.msra.mxu0 0.0
    %2127 = vmatprep.subr.mxu0 0.0
    %2128 = vmatpush1.msra.mxu0 0.0
    %2129 = vmatprep.subr.mxu0 0.0
    %2130 = vmatpush1.msra.mxu0 0.0
    %2131 = vmatprep.subr.mxu0 0.0
    %2132 = vmatpush1.msra.mxu0 0.0
    %2133 = vmatprep.subr.mxu0 0.0
    %2134 = vmatpush1.msra.mxu0 0.0
    %2135 = vmatprep.subr.mxu0 0.0
    %2136 = vmatpush1.msra.mxu0 0.0
    %2137 = vmatprep.subr.mxu0 0.0
    %2138 = vmatpush1.msra.mxu0 0.0
    %2139 = vmatprep.subr.mxu0 0.0
    %2140 = vmatpush1.msra.mxu0 0.0
    %2141 = vmatprep.subr.mxu0 0.0
    %2142 = vmatpush1.msra.mxu0 0.0
    %2143 = vmatprep.subr.mxu0 0.0
    %2144 = vmatpush1.msra.mxu0 0.0
    %2145 = vmatprep.subr.mxu0 0.0
    %2146 = vmatpush1.msra.mxu0 %v262
    %2147 = vmatprep.subr.mxu0 0.0
    %2148 = vmatpush2.msra.mxu0 0.0
    %2149 = vmatprep.subr.mxu0 0.0
    %2150 = vmatpush2.msra.mxu0 0.0
    %2151 = vmatprep.subr.mxu0 0.0
    %2152 = vmatpush2.msra.mxu0 0.0
    %2153 = vmatprep.subr.mxu0 0.0
    %2154 = vmatpush2.msra.mxu0 0.0
    %2155 = vmatprep.subr.mxu0 0.0
    %2156 = vmatpush2.msra.mxu0 0.0
    %2157 = vmatprep.subr.mxu0 0.0
    %2158 = vmatpush2.msra.mxu0 0.0
    %2159 = vmatprep.subr.mxu0 0.0
    %2160 = vmatpush2.msra.mxu0 0.0
    %2161 = vmatprep.subr.mxu0 0.0
    %2162 = vmatpush2.msra.mxu0 0.0
    %2163 = vmatprep.subr.mxu0 0.0
    %2164 = vmatpush2.msra.mxu0 0.0
    %2165 = vmatprep.subr.mxu0 0.0
    %2166 = vmatpush2.msra.mxu0 0.0
    %2167 = vmatprep.subr.mxu0 0.0
    %2168 = vmatpush2.msra.mxu0 0.0
    %2169 = vmatprep.subr.mxu0 0.0
    %2170 = vmatpush2.msra.mxu0 0.0
    %2171 = vmatprep.subr.mxu0 0.0
    %2172 = vmatpush2.msra.mxu0 0.0
    %2173 = vmatprep.subr.mxu0 0.0
    %2174 = vmatpush2.msra.mxu0 0.0
    %2175 = vmatprep.subr.mxu0 0.0
    %2176 = vmatpush2.msra.mxu0 0.0
    %2177 = vmatprep.subr.mxu0 0.0
    %2178 = vmatpush2.msra.mxu0 0.0
    %2179 = vmatprep.mubr.f32.mxu0 0.0
    %2180 = vmatmul.mubr.f32.gmra.mxu0 %v2113
    %v2181 = vpop.f32.mrf.mxu0
    %v2182 = vadd.f32 0.0, %v2181
    %v2183 = vpop.f32.mrf.mxu0
    %2184 = vdwg.mxu0
    %v2185 = vadd.f32 %v1944, %v2182
    %v2186 = vld [vmem:[%s9] sm:$0x1]
    %v2188 = vlaneseq
    %v2189 = vshrl.u32 %v2188, 7
    %v2190 = vsub.s32 0, %v2189
    %v2191 = vrot.slane %v2186, %v2190
    %v2193 = vadd.f32 %v1224, %v2191
    %v2194 = vadd.f32 %v2185, %v2191
    %v2195 = vadd.f32 %v165, %v2193
    %v2196 = vadd.f32 %v166, %v2194
    %v2197 = vsel %vm78, %v2195, 0.0
    %2198 = vadd.xlane.f32.xlu0 %v2197
    %v2199 = vpop.xlane.xlu0 %2198
    %v2200 = vsel %vm78, %v2196, 0.0
    %2201 = vadd.xlane.f32.xlu0 %v2200
    %v2202 = vpop.xlane.xlu0 %2201
    %v2203 = vrcp.pop 32.0
    %v2204 = vmul.f32 %v2199, %v2203
    %v2205 = vmul.f32 %v2202, %v2203
    %v2206 = vsub.f32 %v2195, %v2204
    %v2207 = vsub.f32 %v2196, %v2205
    %v2208 = vmul.f32 %v2206, %v2206
    %v2209 = vmul.f32 %v2207, %v2207
    %v2210 = vsel %vm78, %v2208, 0.0
    %2211 = vadd.xlane.f32.xlu0 %v2210
    %v2212 = vpop.xlane.xlu0 %2211
    %v2213 = vsel %vm78, %v2209, 0.0
    %2214 = vadd.xlane.f32.xlu0 %v2213
    %v2215 = vpop.xlane.xlu0 %2214
    %v2216 = vmul.f32 %v2212, %v2203
    %v2217 = vmul.f32 %v2215, %v2203
    %v2218 = vadd.f32 %v2216, 1e-05
    %v2219 = vadd.f32 %v2217, 1e-05
    %v2220 = vrsqrt.pop %v2218
    %v2221 = vrsqrt.pop %v2219
    %v2222 = vmul.f32 %v2206, %v2220
    %v2223 = vmul.f32 %v2207, %v2221
    %v2224 = vld [vmem:[%s10] sm:$0x1]
    %v2226 = vlaneseq
    %v2227 = vshrl.u32 %v2226, 7
    %v2228 = vsub.s32 0, %v2227
    %v2229 = vrot.slane %v2224, %v2228
    %v2231 = vmul.f32 %v2222, %v2229
    %v2232 = vmul.f32 %v2223, %v2229
    %v2233 = vld [vmem:[%s11] sm:$0x1]
    %v2235 = vlaneseq
    %v2236 = vshrl.u32 %v2235, 7
    %v2237 = vsub.s32 0, %v2236
    %v2238 = vrot.slane %v2233, %v2237
    %v2240 = vadd.f32 %v2231, %v2238
    %v2241 = vadd.f32 %v2232, %v2238
    %v2242 = vld [vmem:[%s12] sm:$0xff]
    %v2243 = vld [vmem:[%s12 + $0x8] sm:$0xff]
    %v2244 = vld [vmem:[%s12 + $0x10] sm:$0xff]
    %v2245 = vld [vmem:[%s12 + $0x18] sm:$0xff]
    %v2246 = vld [vmem:[%s13] sm:$0x1]
    %v2248 = vlaneseq
    %v2249 = vshrl.u32 %v2248, 7
    %v2250 = vsub.s32 0, %v2249
    %v2251 = vrot.slane %v2246, %v2250
    %v2254 = vsel %vm78, %v2240, 0
    %v2257 = vsel %vm78, %v2241, 0
    %2259 = vmatprep.subr.mxu0 0.0
    %2260 = vmatpush1.msra.mxu0 0.0
    %2261 = vmatprep.subr.mxu0 0.0
    %2262 = vmatpush1.msra.mxu0 0.0
    %2263 = vmatprep.subr.mxu0 0.0
    %2264 = vmatpush1.msra.mxu0 0.0
    %2265 = vmatprep.subr.mxu0 0.0
    %2266 = vmatpush1.msra.mxu0 0.0
    %2267 = vmatprep.subr.mxu0 0.0
    %2268 = vmatpush1.msra.mxu0 0.0
    %2269 = vmatprep.subr.mxu0 0.0
    %2270 = vmatpush1.msra.mxu0 0.0
    %2271 = vmatprep.subr.mxu0 0.0
    %2272 = vmatpush1.msra.mxu0 0.0
    %2273 = vmatprep.subr.mxu0 0.0
    %2274 = vmatpush1.msra.mxu0 0.0
    %2275 = vmatprep.subr.mxu0 0.0
    %2276 = vmatpush1.msra.mxu0 0.0
    %2277 = vmatprep.subr.mxu0 0.0
    %2278 = vmatpush1.msra.mxu0 0.0
    %2279 = vmatprep.subr.mxu0 0.0
    %2280 = vmatpush1.msra.mxu0 0.0
    %2281 = vmatprep.subr.mxu0 0.0
    %2282 = vmatpush1.msra.mxu0 0.0
    %2283 = vmatprep.subr.mxu0 0.0
    %2284 = vmatpush1.msra.mxu0 %v2245
    %2285 = vmatprep.subr.mxu0 0.0
    %2286 = vmatpush1.msra.mxu0 %v2244
    %2287 = vmatprep.subr.mxu0 0.0
    %2288 = vmatpush1.msra.mxu0 %v2243
    %2289 = vmatprep.subr.mxu0 0.0
    %2290 = vmatpush1.msra.mxu0 %v2242
    %2291 = vmatprep.subr.mxu0 0.0
    %2292 = vmatpush2.msra.mxu0 0.0
    %2293 = vmatprep.subr.mxu0 0.0
    %2294 = vmatpush2.msra.mxu0 0.0
    %2295 = vmatprep.subr.mxu0 0.0
    %2296 = vmatpush2.msra.mxu0 0.0
    %2297 = vmatprep.subr.mxu0 0.0
    %2298 = vmatpush2.msra.mxu0 0.0
    %2299 = vmatprep.subr.mxu0 0.0
    %2300 = vmatpush2.msra.mxu0 0.0
    %2301 = vmatprep.subr.mxu0 0.0
    %2302 = vmatpush2.msra.mxu0 0.0
    %2303 = vmatprep.subr.mxu0 0.0
    %2304 = vmatpush2.msra.mxu0 0.0
    %2305 = vmatprep.subr.mxu0 0.0
    %2306 = vmatpush2.msra.mxu0 0.0
    %2307 = vmatprep.subr.mxu0 0.0
    %2308 = vmatpush2.msra.mxu0 0.0
    %2309 = vmatprep.subr.mxu0 0.0
    %2310 = vmatpush2.msra.mxu0 0.0
    %2311 = vmatprep.subr.mxu0 0.0
    %2312 = vmatpush2.msra.mxu0 0.0
    %2313 = vmatprep.subr.mxu0 0.0
    %2314 = vmatpush2.msra.mxu0 0.0
    %2315 = vmatprep.subr.mxu0 0.0
    %2316 = vmatpush2.msra.mxu0 0.0
    %2317 = vmatprep.subr.mxu0 0.0
    %2318 = vmatpush2.msra.mxu0 0.0
    %2319 = vmatprep.subr.mxu0 0.0
    %2320 = vmatpush2.msra.mxu0 0.0
    %2321 = vmatprep.subr.mxu0 0.0
    %2322 = vmatpush2.msra.mxu0 0.0
    %2323 = vmatprep.mubr.f32.mxu0 0.0
    %2324 = vmatmul.mubr.f32.gmra.mxu0 %v2254
    %v2325 = vpop.f32.mrf.mxu0
    %v2326 = vadd.f32 %v2251, %v2325
    %v2327 = vpop.f32.mrf.mxu0
    %2328 = vmatprep.mubr.f32.mxu0 0.0
    %2329 = vmatmul.mubr.f32.gmra.mxu0 %v2257
    %v2330 = vpop.f32.mrf.mxu0
    %v2331 = vadd.f32 %v2251, %v2330
    %v2332 = vpop.f32.mrf.mxu0
    %2333 = vdwg.mxu0
    %v2334 = vmax.f32 %v2326, 0.0
    %v2335 = vmax.f32 %v2331, 0.0
    %v2336 = vld [vmem:[%s14] sm:$0xff]
    %v2337 = vld [vmem:[%s14 + $0x8] sm:$0xff]
    %v2338 = vld [vmem:[%s14 + $0x10] sm:$0xff]
    %v2339 = vld [vmem:[%s14 + $0x18] sm:$0xff]
    %v2340 = vld [vmem:[%s14 + $0x20] sm:$0xff]
    %v2341 = vld [vmem:[%s14 + $0x28] sm:$0xff]
    %v2342 = vld [vmem:[%s14 + $0x30] sm:$0xff]
    %v2343 = vld [vmem:[%s14 + $0x38] sm:$0xff]
    %v2344 = vld [vmem:[%s15] sm:$0x1]
    %v2346 = vlaneseq
    %v2347 = vshrl.u32 %v2346, 7
    %v2348 = vsub.s32 0, %v2347
    %v2349 = vrot.slane %v2344, %v2348
    %vm2351 = vcmask 523264
    %v2353 = vsel %vm2351, %v2334, 0
    %v2356 = vsel %vm2351, %v2335, 0
    %2358 = vmatprep.subr.mxu0 0.0
    %2359 = vmatpush1.msra.mxu0 0.0
    %2360 = vmatprep.subr.mxu0 0.0
    %2361 = vmatpush1.msra.mxu0 0.0
    %2362 = vmatprep.subr.mxu0 0.0
    %2363 = vmatpush1.msra.mxu0 0.0
    %2364 = vmatprep.subr.mxu0 0.0
    %2365 = vmatpush1.msra.mxu0 0.0
    %2366 = vmatprep.subr.mxu0 0.0
    %2367 = vmatpush1.msra.mxu0 0.0
    %2368 = vmatprep.subr.mxu0 0.0
    %2369 = vmatpush1.msra.mxu0 0.0
    %2370 = vmatprep.subr.mxu0 0.0
    %2371 = vmatpush1.msra.mxu0 0.0
    %2372 = vmatprep.subr.mxu0 0.0
    %2373 = vmatpush1.msra.mxu0 0.0
    %2374 = vmatprep.subr.mxu0 0.0
    %2375 = vmatpush1.msra.mxu0 %v2343
    %2376 = vmatprep.subr.mxu0 0.0
    %2377 = vmatpush1.msra.mxu0 %v2342
    %2378 = vmatprep.subr.mxu0 0.0
    %2379 = vmatpush1.msra.mxu0 %v2341
    %2380 = vmatprep.subr.mxu0 0.0
    %2381 = vmatpush1.msra.mxu0 %v2340
    %2382 = vmatprep.subr.mxu0 0.0
    %2383 = vmatpush1.msra.mxu0 %v2339
    %2384 = vmatprep.subr.mxu0 0.0
    %2385 = vmatpush1.msra.mxu0 %v2338
    %2386 = vmatprep.subr.mxu0 0.0
    %2387 = vmatpush1.msra.mxu0 %v2337
    %2388 = vmatprep.subr.mxu0 0.0
    %2389 = vmatpush1.msra.mxu0 %v2336
    %2390 = vmatprep.subr.mxu0 0.0
    %2391 = vmatpush2.msra.mxu0 0.0
    %2392 = vmatprep.subr.mxu0 0.0
    %2393 = vmatpush2.msra.mxu0 0.0
    %2394 = vmatprep.subr.mxu0 0.0
    %2395 = vmatpush2.msra.mxu0 0.0
    %2396 = vmatprep.subr.mxu0 0.0
    %2397 = vmatpush2.msra.mxu0 0.0
    %2398 = vmatprep.subr.mxu0 0.0
    %2399 = vmatpush2.msra.mxu0 0.0
    %2400 = vmatprep.subr.mxu0 0.0
    %2401 = vmatpush2.msra.mxu0 0.0
    %2402 = vmatprep.subr.mxu0 0.0
    %2403 = vmatpush2.msra.mxu0 0.0
    %2404 = vmatprep.subr.mxu0 0.0
    %2405 = vmatpush2.msra.mxu0 0.0
    %2406 = vmatprep.subr.mxu0 0.0
    %2407 = vmatpush2.msra.mxu0 0.0
    %2408 = vmatprep.subr.mxu0 0.0
    %2409 = vmatpush2.msra.mxu0 0.0
    %2410 = vmatprep.subr.mxu0 0.0
    %2411 = vmatpush2.msra.mxu0 0.0
    %2412 = vmatprep.subr.mxu0 0.0
    %2413 = vmatpush2.msra.mxu0 0.0
    %2414 = vmatprep.subr.mxu0 0.0
    %2415 = vmatpush2.msra.mxu0 0.0
    %2416 = vmatprep.subr.mxu0 0.0
    %2417 = vmatpush2.msra.mxu0 0.0
    %2418 = vmatprep.subr.mxu0 0.0
    %2419 = vmatpush2.msra.mxu0 0.0
    %2420 = vmatprep.subr.mxu0 0.0
    %2421 = vmatpush2.msra.mxu0 0.0
    %2422 = vmatprep.mubr.f32.mxu0 0.0
    %2423 = vmatmul.mubr.f32.gmra.mxu0 %v2353
    %v2424 = vpop.f32.mrf.mxu0
    %v2425 = vadd.f32 %v2349, %v2424
    %v2426 = vpop.f32.mrf.mxu0
    %2427 = vmatprep.mubr.f32.mxu0 0.0
    %2428 = vmatmul.mubr.f32.gmra.mxu0 %v2356
    %v2429 = vpop.f32.mrf.mxu0
    %v2430 = vadd.f32 %v2349, %v2429
    %v2431 = vpop.f32.mrf.mxu0
    %2432 = vdwg.mxu0
    %v2433 = vadd.f32 %v2240, %v2425
    %v2434 = vadd.f32 %v2241, %v2430
    %v2435 = vsel %vm78, %v2433, 0.0
    %2436 = vadd.xlane.f32.xlu0 %v2435
    %v2437 = vpop.xlane.xlu0 %2436
    %v2438 = vsel %vm78, %v2434, 0.0
    %2439 = vadd.xlane.f32.xlu0 %v2438
    %v2440 = vpop.xlane.xlu0 %2439
    %v2441 = vmul.f32 %v2437, %v2203
    %v2442 = vmul.f32 %v2440, %v2203
    %v2443 = vsub.f32 %v2433, %v2441
    %v2444 = vsub.f32 %v2434, %v2442
    %v2445 = vmul.f32 %v2443, %v2443
    %v2446 = vmul.f32 %v2444, %v2444
    %v2447 = vsel %vm78, %v2445, 0.0
    %2448 = vadd.xlane.f32.xlu0 %v2447
    %v2449 = vpop.xlane.xlu0 %2448
    %v2450 = vsel %vm78, %v2446, 0.0
    %2451 = vadd.xlane.f32.xlu0 %v2450
    %v2452 = vpop.xlane.xlu0 %2451
    %v2453 = vmul.f32 %v2449, %v2203
    %v2454 = vmul.f32 %v2452, %v2203
    %v2455 = vadd.f32 %v2453, 1e-05
    %v2456 = vadd.f32 %v2454, 1e-05
    %v2457 = vrsqrt.pop %v2455
    %v2458 = vrsqrt.pop %v2456
    %v2459 = vmul.f32 %v2443, %v2457
    %v2460 = vmul.f32 %v2444, %v2458
    %v2461 = vld [vmem:[%s16] sm:$0x1]
    %v2463 = vlaneseq
    %v2464 = vshrl.u32 %v2463, 7
    %v2465 = vsub.s32 0, %v2464
    %v2466 = vrot.slane %v2461, %v2465
    %v2468 = vmul.f32 %v2459, %v2466
    %v2469 = vmul.f32 %v2460, %v2466
    %v2470 = vld [vmem:[%s17] sm:$0x1]
    %v2472 = vlaneseq
    %v2473 = vshrl.u32 %v2472, 7
    %v2474 = vsub.s32 0, %v2473
    %v2475 = vrot.slane %v2470, %v2474
    %v2477 = vadd.f32 %v2468, %v2475
    %v2478 = vadd.f32 %v2469, %v2475
    %2479 = vst.msk [vmem:[#allocation3] sm:$0xff] %vm78, %v2477
    %2480 = vst.msk [vmem:[#allocation3 + $0x8] sm:$0xff] %vm78, %v2478
    // Predicated region
    $region74: #{_pe_encoder.1} parent=1 // pred_check
      _
    $region75: #{_pe_encoder.1} parent=1 // pred_check_branch
      %2482 = sbr.rel (0) target = $region77
    $region76: #{_pe_encoder.1} parent=1 // pred_region
      %s2484 = ssub.s32 256, 256
      %2485 = vsyncadd [#allocation4], %s2484
      %s2486 = sshll.u32 [#allocation3], 4
      %s2487 = int_to_ptr.vmem [resolvable:$true] %s2486
      %2492 = dma.vmem_to_hbm [thread:$0]  %s2487, 256, %s18, [#allocation4], 128, 128, 8
    $region77: #{_pe_encoder.1} parent=1 // pred_fallthru
      _
    // Predicated region
    $region78: #{_pe_encoder.1} parent=1 // pred_check
      _
    $region79: #{_pe_encoder.1} parent=1 // pred_check_branch
      %2494 = sbr.rel (0) target = $region81
    $region80: #{_pe_encoder.1} parent=1 // pred_region
      %2495 = dma.done [#allocation4], 256
    $region81: #{_pe_encoder.1} parent=1 // pred_fallthru
      _
    %2496 = vsyncpa [#allocation4], 1

</llo_original>
